<compile_context>
chip_gen: v6e
topology: v6e:2x2x1
jax: 0.10.0
libtpu: 0.0.40
codegen_flags: <defaults>
</compile_context>

<pallas_src>
import functools

import jax
import jax.numpy as jnp
from jax.experimental import pallas as pl
from jax.experimental.pallas import tpu as pltpu


def _inception_b_kernel(x_ref, w12_ref, b12_ref, w2b_ref, b2b_ref,
                        w2c_ref, b2c_ref, wl_ref, bl_ref, o_ref, *, width):
    # x_ref block: (Bt, C=448, HW) f32 -- NCHW with the spatial dims flattened.
    Bt, C, HW = x_ref.shape
    M = Bt * HW
    Cmid = w2b_ref.shape[-1]                 # 64
    W = width

    # ---- in-VMEM relayout: (Bt, C, HW) -> rows = pixels, lanes = channels ----
    x_rows = jnp.transpose(x_ref[...], (0, 2, 1)).reshape(M, C)
    x_bf = x_rows.astype(jnp.bfloat16)       # f32 transposed copy dies here

    # ---- fused branch1 / branch2a 1x1 convs: (M,448) @ (448,128) ----
    h12 = jnp.dot(x_bf, w12_ref[...],
                  preferred_element_type=jnp.float32) + b12_ref[...]
    b1 = h12[:, :Cmid]                       # branch1 output        (M, 64)
    a = h12[:, Cmid:]                        # branch2 stage-a out   (M, 64)

    # (M,1) flat-row boundary indices; broadcast against (M,64) in the wheres.
    row = jax.lax.broadcasted_iota(jnp.int32, (M, 1), 0)
    w_idx = row % W                          # width position of each pixel row
    hw_idx = row % HW                        # position within one image

    def mm(lhs_f32, rhs_bf16):
        return jnp.dot(lhs_f32.astype(jnp.bfloat16), rhs_bf16,
                       preferred_element_type=jnp.float32)

    # ---- (1,3) conv along width: 3 per-tap (M,64)@(64,64) matmuls, f32 acc ----
    # roll(+1) -> a[m-1] (left neighbor), masked at w==0; roll(M-1) -> a[m+1].
    left = jnp.where(w_idx == 0, 0.0, pltpu.roll(a, shift=1, axis=0))
    right = jnp.where(w_idx == W - 1, 0.0, pltpu.roll(a, shift=M - 1, axis=0))
    bb = (mm(left, w2b_ref[0]) + mm(a, w2b_ref[1]) + mm(right, w2b_ref[2])
          + b2b_ref[...])

    # ---- (3,1) conv along height: 3 per-tap matmuls, f32 acc ----
    up = jnp.where(hw_idx < W, 0.0, pltpu.roll(bb, shift=W, axis=0))
    down = jnp.where(hw_idx >= HW - W, 0.0, pltpu.roll(bb, shift=M - W, axis=0))
    cc = (mm(up, w2c_ref[0]) + mm(bb, w2c_ref[1]) + mm(down, w2c_ref[2])
          + b2c_ref[...])

    # ---- final 1x1: per-branch K=64 matmuls accumulated (no lane concat) ----
    res = mm(b1, wl_ref[0]) + mm(cc, wl_ref[1]) + bl_ref[...]      # (M, 448)

    # ---- back to NC(HW) layout, residual add (f32) + ReLU ----
    res_nc = jnp.transpose(res.reshape(Bt, HW, C), (0, 2, 1))      # (Bt, C, HW)
    o_ref[...] = jnp.maximum(x_ref[...] + res_nc, 0.0).astype(o_ref.dtype)


def _const_spec(w):
    nd = w.ndim
    return pl.BlockSpec(w.shape, lambda b, _nd=nd: (0,) * _nd)


def _choose_batch_tile(n, hw, target_rows=512, min_steps=2):
    """~target_rows matmul rows per grid step, but keep >= min_steps grid
    steps whenever n allows (v7x megacore sharding / pipeline overlap)."""
    bt = max(1, min(n, -(-target_rows // hw)))
    while bt > 1 and -(-n // bt) < min_steps:
        bt -= 1
    return bt


def inception_resnet_b(x_nchw, p):
    """x_nchw: (N, 448, H, W) float32 -> (N, 448, H, W) float32."""
    N, C, H, W = x_nchw.shape
    HW = H * W
    bt = _choose_batch_tile(N, HW)
    steps = -(-N // bt)
    n_pad = steps * bt

    # Free (metadata-only) reshape; no NCHW<->NHWC transpose in the wrapper.
    x = x_nchw.reshape(N, C, HW)
    if n_pad != N:
        x = jnp.pad(x, ((0, n_pad - N), (0, 0), (0, 0)))

    weights = [p["w12"], p["b12"], p["w2b"], p["b2b"],
               p["w2c"], p["b2c"], p["wl"], p["bl"]]
    kernel = functools.partial(_inception_b_kernel, width=W)

    out = pl.pallas_call(
        kernel,
        out_shape=jax.ShapeDtypeStruct((n_pad, C, HW), jnp.float32),
        grid=(steps,),
        in_specs=[pl.BlockSpec((bt, C, HW), lambda b: (b, 0, 0))]
                 + [_const_spec(w) for w in weights],
        out_specs=pl.BlockSpec((bt, C, HW), lambda b: (b, 0, 0)),
        compiler_params=pltpu.CompilerParams(dimension_semantics=("parallel",)),
    )(x, *weights)
    return out[:N].reshape(N, C, H, W)


def ref_forward_nchw(x, w1_raw, b1, w2a_raw, b2a, w2b_raw, b2b,
                     w2c_raw, b2c, wl_raw, bl):
    """Pure-JAX reference that mirrors the PyTorch forward (NCHW / OIHW, f32)."""
    def conv(x, w, b, pad):
        out = jax.lax.conv_general_dilated(
            x, w, (1, 1), pad,
            dimension_numbers=("NCHW", "OIHW", "NCHW"),
            precision=jax.lax.Precision.HIGHEST)
        return out + b[None, :, None, None]

    r1 = conv(x, w1_raw, b1, "VALID")
    r2 = conv(x, w2a_raw, b2a, "VALID")
    r2 = conv(r2, w2b_raw, b2b, "SAME")
    r2 = conv(r2, w2c_raw, b2c, "SAME")
    res = jnp.concatenate([r1, r2], axis=1)
    res = conv(res, wl_raw, bl, "VALID")
    return jnp.maximum(x + res, 0.0)


if __name__ == "__main__":
    key = jax.random.PRNGKey(0)
    keys = jax.random.split(key, 12)
    N, C, H, W = 2, 448, 8, 8
    x = jax.random.normal(keys[0], (N, C, H, W), jnp.float32)

    def u(k, shape, fan_in):
        bound = 1.0 / float(fan_in) ** 0.5
        return jax.random.uniform(k, shape, jnp.float32, -bound, bound)

    # Raw PyTorch-shaped parameters (OIHW weights, per-output-channel biases).
    w1_raw = u(keys[1], (64, 448, 1, 1), 448)
    b1 = u(keys[2], (64,), 448)
    w2a_raw = u(keys[3], (64, 448, 1, 1), 448)
    b2a = u(keys[4], (64,), 448)
    w2b_raw = u(keys[5], (64, 64, 1, 3), 64 * 3)
    b2b = u(keys[6], (64,), 64 * 3)
    w2c_raw = u(keys[7], (64, 64, 3, 1), 64 * 3)
    b2c = u(keys[8], (64,), 64 * 3)
    wl_raw = u(keys[9], (448, 128, 1, 1), 128)
    bl = u(keys[10], (448,), 128)

    # Kernel-friendly packed forms (weights pre-cast to bf16, biases kept f32):
    #  - w12: branch1 / branch2a 1x1 convs fused column-wise -> (448, 128)
    #  - w2b/w2c: per-tap weights stacked -> (3, 64, 64), tap order [-1, 0, +1]
    #  - wl: (2, 64, 448); wl[0] = branch1 rows, wl[1] = branch2 rows
    w12 = jnp.concatenate([w1_raw[:, :, 0, 0].T, w2a_raw[:, :, 0, 0].T], axis=1)
    b12 = jnp.concatenate([b1, b2a])[None, :]
    w2b = jnp.transpose(w2b_raw[:, :, 0, :], (2, 1, 0))          # (3, 64, 64)
    w2c = jnp.transpose(w2c_raw[:, :, :, 0], (2, 1, 0))          # (3, 64, 64)
    wl = wl_raw[:, :, 0, 0].T.reshape(2, 64, 448)                # (2, 64, 448)
    params = {
        "w12": w12.astype(jnp.bfloat16),
        "b12": b12.astype(jnp.float32),
        "w2b": w2b.astype(jnp.bfloat16),
        "b2b": b2b[None, :].astype(jnp.float32),
        "w2c": w2c.astype(jnp.bfloat16),
        "b2c": b2c[None, :].astype(jnp.float32),
        "wl": wl.astype(jnp.bfloat16),
        "bl": bl[None, :].astype(jnp.float32),
    }

    y = inception_resnet_b(x, params)
    jax.block_until_ready(y)

    y_ref = ref_forward_nchw(x, w1_raw, b1, w2a_raw, b2a, w2b_raw, b2b,
                             w2c_raw, b2c, wl_raw, bl)
    err = float(jnp.max(jnp.abs(y - y_ref)))
    # bf16 MXU inputs with f32 accumulation -> relaxed tolerance vs. f32 ref.
    assert y.shape == (N, C, H, W) and err < 2e-2, f"max abs err {err}"
    print("KERNEL_OK")
</pallas_src>

<mosaic_0001>
module attributes {stable_mosaic.version = 11 : i64} {
  func.func @_inception_b_kernel(%arg0: i32, %arg1: memref<1x448x64xf32, #tpu.memory_space<vmem>>, %arg2: memref<448x128xbf16, #tpu.memory_space<vmem>>, %arg3: memref<1x128xf32, #tpu.memory_space<vmem>>, %arg4: memref<3x64x64xbf16, #tpu.memory_space<vmem>>, %arg5: memref<1x64xf32, #tpu.memory_space<vmem>>, %arg6: memref<3x64x64xbf16, #tpu.memory_space<vmem>>, %arg7: memref<1x64xf32, #tpu.memory_space<vmem>>, %arg8: memref<2x64x448xbf16, #tpu.memory_space<vmem>>, %arg9: memref<1x448xf32, #tpu.memory_space<vmem>>, %arg10: memref<1x448x64xf32, #tpu.memory_space<vmem>>) attributes {dimension_semantics = [#tpu.dimension_semantics<parallel>], iteration_bounds = array<i64: 2>, scalar_prefetch = 0 : i64, scratch_operands = 0 : i64, tpu.core_type = #tpu.core_type<tc>, window_params = [{transform_indices = @transform_0, window_bounds = array<i64: 1, 448, 64>}, {pipeline_mode = #tpu.pipeline_mode<synchronous>, transform_indices = @transform_1, window_bounds = array<i64: 448, 128>}, {pipeline_mode = #tpu.pipeline_mode<synchronous>, transform_indices = @transform_2, window_bounds = array<i64: 1, 128>}, {pipeline_mode = #tpu.pipeline_mode<synchronous>, transform_indices = @transform_3, window_bounds = array<i64: 3, 64, 64>}, {pipeline_mode = #tpu.pipeline_mode<synchronous>, transform_indices = @transform_4, window_bounds = array<i64: 1, 64>}, {pipeline_mode = #tpu.pipeline_mode<synchronous>, transform_indices = @transform_5, window_bounds = array<i64: 3, 64, 64>}, {pipeline_mode = #tpu.pipeline_mode<synchronous>, transform_indices = @transform_6, window_bounds = array<i64: 1, 64>}, {pipeline_mode = #tpu.pipeline_mode<synchronous>, transform_indices = @transform_7, window_bounds = array<i64: 2, 64, 448>}, {pipeline_mode = #tpu.pipeline_mode<synchronous>, transform_indices = @transform_8, window_bounds = array<i64: 1, 448>}, {transform_indices = @transform_9, window_bounds = array<i64: 1, 448, 64>}]} {
    %c0 = arith.constant 0 : index
    %c0_0 = arith.constant 0 : index
    %c0_1 = arith.constant 0 : index
    %0 = vector.load %arg1[%c0, %c0_0, %c0_1] : memref<1x448x64xf32, #tpu.memory_space<vmem>>, vector<1x448x64xf32>
    %1 = tpu.transpose %0, [0, 2, 1] : vector<1x448x64xf32> -> vector<1x64x448xf32>
    %2 = vector.shape_cast %1 : vector<1x64x448xf32> to vector<64x448xf32>
    %3 = arith.truncf %2 : vector<64x448xf32> to vector<64x448xbf16>
    %c0_2 = arith.constant 0 : index
    %c0_3 = arith.constant 0 : index
    %4 = vector.load %arg2[%c0_2, %c0_3] : memref<448x128xbf16, #tpu.memory_space<vmem>>, vector<448x128xbf16>
    %cst = arith.constant dense<0.000000e+00> : vector<64x128xf32>
    %5 = tpu.matmul %3, %4, %cst {dimension_numbers = #tpu.dot_dimension_numbers<[1], [0], [0], [1], [0, 0, 1, 1], [], []>} : vector<64x448xbf16>, vector<448x128xbf16>, vector<64x128xf32> -> vector<64x128xf32>
    %c0_4 = arith.constant 0 : index
    %c0_5 = arith.constant 0 : index
    %6 = vector.load %arg3[%c0_4, %c0_5] : memref<1x128xf32, #tpu.memory_space<vmem>>, vector<1x128xf32>
    %7 = vector.broadcast %6 : vector<1x128xf32> to vector<64x128xf32>
    %8 = arith.addf %5, %7 : vector<64x128xf32>
    %9 = vector.extract_strided_slice %8 {offsets = [0, 0], sizes = [64, 64], strides = [1, 1]} : vector<64x128xf32> to vector<64x64xf32>
    %10 = vector.extract_strided_slice %8 {offsets = [0, 64], sizes = [64, 64], strides = [1, 1]} : vector<64x128xf32> to vector<64x64xf32>
    %11 = tpu.iota {dimensions = array<i32: 0>} : vector<64x1xi32>
    %c8_i32 = arith.constant 8 : i32
    %c0_i32 = arith.constant 0 : i32
    %12 = arith.cmpi eq, %c8_i32, %c0_i32 : i32
    %c1_i32 = arith.constant 1 : i32
    %13 = arith.select %12, %c1_i32, %c8_i32 : i32
    %14 = vector.broadcast %13 : i32 to vector<64x1xi32>
    %15 = arith.remsi %11, %14 : vector<64x1xi32>
    %c0_i32_6 = arith.constant 0 : i32
    %16 = vector.broadcast %c0_i32_6 : i32 to vector<64x1xi32>
    %17 = arith.cmpi ne, %15, %16 : vector<64x1xi32>
    %c0_i32_7 = arith.constant 0 : i32
    %18 = vector.broadcast %c0_i32_7 : i32 to vector<64x1xi32>
    %19 = arith.cmpi slt, %15, %18 : vector<64x1xi32>
    %c0_i32_8 = arith.constant 0 : i32
    %20 = arith.cmpi slt, %13, %c0_i32_8 : i32
    %21 = vector.broadcast %20 : i1 to vector<64x1xi1>
    %22 = vector.broadcast %21 : vector<64x1xi1> to vector<64x1xi1>
    %23 = arith.xori %19, %22 : vector<64x1xi1>
    %24 = arith.andi %23, %17 : vector<64x1xi1>
    %25 = vector.broadcast %13 : i32 to vector<64x1xi32>
    %26 = arith.addi %15, %25 : vector<64x1xi32>
    %27 = arith.select %24, %26, %15 : vector<64x1xi1>, vector<64x1xi32>
    %c64_i32 = arith.constant 64 : i32
    %c0_i32_9 = arith.constant 0 : i32
    %28 = arith.cmpi eq, %c64_i32, %c0_i32_9 : i32
    %c1_i32_10 = arith.constant 1 : i32
    %29 = arith.select %28, %c1_i32_10, %c64_i32 : i32
    %30 = vector.broadcast %29 : i32 to vector<64x1xi32>
    %31 = arith.remsi %11, %30 : vector<64x1xi32>
    %c0_i32_11 = arith.constant 0 : i32
    %32 = vector.broadcast %c0_i32_11 : i32 to vector<64x1xi32>
    %33 = arith.cmpi ne, %31, %32 : vector<64x1xi32>
    %c0_i32_12 = arith.constant 0 : i32
    %34 = vector.broadcast %c0_i32_12 : i32 to vector<64x1xi32>
    %35 = arith.cmpi slt, %31, %34 : vector<64x1xi32>
    %c0_i32_13 = arith.constant 0 : i32
    %36 = arith.cmpi slt, %29, %c0_i32_13 : i32
    %37 = vector.broadcast %36 : i1 to vector<64x1xi1>
    %38 = vector.broadcast %37 : vector<64x1xi1> to vector<64x1xi1>
    %39 = arith.xori %35, %38 : vector<64x1xi1>
    %40 = arith.andi %39, %33 : vector<64x1xi1>
    %41 = vector.broadcast %29 : i32 to vector<64x1xi32>
    %42 = arith.addi %31, %41 : vector<64x1xi32>
    %43 = arith.select %40, %42, %31 : vector<64x1xi1>, vector<64x1xi32>
    %c0_i32_14 = arith.constant 0 : i32
    %44 = vector.broadcast %c0_i32_14 : i32 to vector<64x1xi32>
    %45 = arith.cmpi eq, %27, %44 : vector<64x1xi32>
    %c1_i32_15 = arith.constant 1 : i32
    %46 = tpu.dynamic_rotate %10 by %c1_i32_15 dim 0 : vector<64x64xf32>, i32 -> vector<64x64xf32>
    %cst_16 = arith.constant 0.000000e+00 : f32
    %47 = vector.shape_cast %45 : vector<64x1xi1> to vector<64x1xi1>
    %48 = vector.broadcast %47 : vector<64x1xi1> to vector<64x64xi1>
    %49 = vector.broadcast %cst_16 : f32 to vector<64x64xf32>
    %50 = arith.select %48, %49, %46 : vector<64x64xi1>, vector<64x64xf32>
    %c7_i32 = arith.constant 7 : i32
    %51 = vector.broadcast %c7_i32 : i32 to vector<64x1xi32>
    %52 = arith.cmpi eq, %27, %51 : vector<64x1xi32>
    %c63_i32 = arith.constant 63 : i32
    %53 = tpu.dynamic_rotate %10 by %c63_i32 dim 0 : vector<64x64xf32>, i32 -> vector<64x64xf32>
    %cst_17 = arith.constant 0.000000e+00 : f32
    %54 = vector.shape_cast %52 : vector<64x1xi1> to vector<64x1xi1>
    %55 = vector.broadcast %54 : vector<64x1xi1> to vector<64x64xi1>
    %56 = vector.broadcast %cst_17 : f32 to vector<64x64xf32>
    %57 = arith.select %55, %56, %53 : vector<64x64xi1>, vector<64x64xf32>
    %c0_18 = arith.constant 0 : index
    %c0_19 = arith.constant 0 : index
    %c0_20 = arith.constant 0 : index
    %58 = vector.load %arg4[%c0_18, %c0_19, %c0_20] : memref<3x64x64xbf16, #tpu.memory_space<vmem>>, vector<1x64x64xbf16>
    %59 = vector.shape_cast %58 : vector<1x64x64xbf16> to vector<64x64xbf16>
    %60 = arith.truncf %50 : vector<64x64xf32> to vector<64x64xbf16>
    %cst_21 = arith.constant dense<0.000000e+00> : vector<64x64xf32>
    %61 = tpu.matmul %60, %59, %cst_21 {dimension_numbers = #tpu.dot_dimension_numbers<[1], [0], [0], [1], [0, 0, 1, 1], [], []>} : vector<64x64xbf16>, vector<64x64xbf16>, vector<64x64xf32> -> vector<64x64xf32>
    %c1 = arith.constant 1 : index
    %c0_22 = arith.constant 0 : index
    %c0_23 = arith.constant 0 : index
    %62 = vector.load %arg4[%c1, %c0_22, %c0_23] : memref<3x64x64xbf16, #tpu.memory_space<vmem>>, vector<1x64x64xbf16>
    %63 = vector.shape_cast %62 : vector<1x64x64xbf16> to vector<64x64xbf16>
    %64 = arith.truncf %10 : vector<64x64xf32> to vector<64x64xbf16>
    %cst_24 = arith.constant dense<0.000000e+00> : vector<64x64xf32>
    %65 = tpu.matmul %64, %63, %cst_24 {dimension_numbers = #tpu.dot_dimension_numbers<[1], [0], [0], [1], [0, 0, 1, 1], [], []>} : vector<64x64xbf16>, vector<64x64xbf16>, vector<64x64xf32> -> vector<64x64xf32>
    %66 = arith.addf %61, %65 : vector<64x64xf32>
    %c2 = arith.constant 2 : index
    %c0_25 = arith.constant 0 : index
    %c0_26 = arith.constant 0 : index
    %67 = vector.load %arg4[%c2, %c0_25, %c0_26] : memref<3x64x64xbf16, #tpu.memory_space<vmem>>, vector<1x64x64xbf16>
    %68 = vector.shape_cast %67 : vector<1x64x64xbf16> to vector<64x64xbf16>
    %69 = arith.truncf %57 : vector<64x64xf32> to vector<64x64xbf16>
    %cst_27 = arith.constant dense<0.000000e+00> : vector<64x64xf32>
    %70 = tpu.matmul %69, %68, %cst_27 {dimension_numbers = #tpu.dot_dimension_numbers<[1], [0], [0], [1], [0, 0, 1, 1], [], []>} : vector<64x64xbf16>, vector<64x64xbf16>, vector<64x64xf32> -> vector<64x64xf32>
    %71 = arith.addf %66, %70 : vector<64x64xf32>
    %c0_28 = arith.constant 0 : index
    %c0_29 = arith.constant 0 : index
    %72 = vector.load %arg5[%c0_28, %c0_29] : memref<1x64xf32, #tpu.memory_space<vmem>>, vector<1x64xf32>
    %73 = vector.broadcast %72 : vector<1x64xf32> to vector<64x64xf32>
    %74 = arith.addf %71, %73 : vector<64x64xf32>
    %c8_i32_30 = arith.constant 8 : i32
    %75 = vector.broadcast %c8_i32_30 : i32 to vector<64x1xi32>
    %76 = arith.cmpi slt, %43, %75 : vector<64x1xi32>
    %c8_i32_31 = arith.constant 8 : i32
    %77 = tpu.dynamic_rotate %74 by %c8_i32_31 dim 0 : vector<64x64xf32>, i32 -> vector<64x64xf32>
    %cst_32 = arith.constant 0.000000e+00 : f32
    %78 = vector.shape_cast %76 : vector<64x1xi1> to vector<64x1xi1>
    %79 = vector.broadcast %78 : vector<64x1xi1> to vector<64x64xi1>
    %80 = vector.broadcast %cst_32 : f32 to vector<64x64xf32>
    %81 = arith.select %79, %80, %77 : vector<64x64xi1>, vector<64x64xf32>
    %c56_i32 = arith.constant 56 : i32
    %82 = vector.broadcast %c56_i32 : i32 to vector<64x1xi32>
    %83 = arith.cmpi sge, %43, %82 : vector<64x1xi32>
    %c56_i32_33 = arith.constant 56 : i32
    %84 = tpu.dynamic_rotate %74 by %c56_i32_33 dim 0 : vector<64x64xf32>, i32 -> vector<64x64xf32>
    %cst_34 = arith.constant 0.000000e+00 : f32
    %85 = vector.shape_cast %83 : vector<64x1xi1> to vector<64x1xi1>
    %86 = vector.broadcast %85 : vector<64x1xi1> to vector<64x64xi1>
    %87 = vector.broadcast %cst_34 : f32 to vector<64x64xf32>
    %88 = arith.select %86, %87, %84 : vector<64x64xi1>, vector<64x64xf32>
    %c0_35 = arith.constant 0 : index
    %c0_36 = arith.constant 0 : index
    %c0_37 = arith.constant 0 : index
    %89 = vector.load %arg6[%c0_35, %c0_36, %c0_37] : memref<3x64x64xbf16, #tpu.memory_space<vmem>>, vector<1x64x64xbf16>
    %90 = vector.shape_cast %89 : vector<1x64x64xbf16> to vector<64x64xbf16>
    %91 = arith.truncf %81 : vector<64x64xf32> to vector<64x64xbf16>
    %cst_38 = arith.constant dense<0.000000e+00> : vector<64x64xf32>
    %92 = tpu.matmul %91, %90, %cst_38 {dimension_numbers = #tpu.dot_dimension_numbers<[1], [0], [0], [1], [0, 0, 1, 1], [], []>} : vector<64x64xbf16>, vector<64x64xbf16>, vector<64x64xf32> -> vector<64x64xf32>
    %c1_39 = arith.constant 1 : index
    %c0_40 = arith.constant 0 : index
    %c0_41 = arith.constant 0 : index
    %93 = vector.load %arg6[%c1_39, %c0_40, %c0_41] : memref<3x64x64xbf16, #tpu.memory_space<vmem>>, vector<1x64x64xbf16>
    %94 = vector.shape_cast %93 : vector<1x64x64xbf16> to vector<64x64xbf16>
    %95 = arith.truncf %74 : vector<64x64xf32> to vector<64x64xbf16>
    %cst_42 = arith.constant dense<0.000000e+00> : vector<64x64xf32>
    %96 = tpu.matmul %95, %94, %cst_42 {dimension_numbers = #tpu.dot_dimension_numbers<[1], [0], [0], [1], [0, 0, 1, 1], [], []>} : vector<64x64xbf16>, vector<64x64xbf16>, vector<64x64xf32> -> vector<64x64xf32>
    %97 = arith.addf %92, %96 : vector<64x64xf32>
    %c2_43 = arith.constant 2 : index
    %c0_44 = arith.constant 0 : index
    %c0_45 = arith.constant 0 : index
    %98 = vector.load %arg6[%c2_43, %c0_44, %c0_45] : memref<3x64x64xbf16, #tpu.memory_space<vmem>>, vector<1x64x64xbf16>
    %99 = vector.shape_cast %98 : vector<1x64x64xbf16> to vector<64x64xbf16>
    %100 = arith.truncf %88 : vector<64x64xf32> to vector<64x64xbf16>
    %cst_46 = arith.constant dense<0.000000e+00> : vector<64x64xf32>
    %101 = tpu.matmul %100, %99, %cst_46 {dimension_numbers = #tpu.dot_dimension_numbers<[1], [0], [0], [1], [0, 0, 1, 1], [], []>} : vector<64x64xbf16>, vector<64x64xbf16>, vector<64x64xf32> -> vector<64x64xf32>
    %102 = arith.addf %97, %101 : vector<64x64xf32>
    %c0_47 = arith.constant 0 : index
    %c0_48 = arith.constant 0 : index
    %103 = vector.load %arg7[%c0_47, %c0_48] : memref<1x64xf32, #tpu.memory_space<vmem>>, vector<1x64xf32>
    %104 = vector.broadcast %103 : vector<1x64xf32> to vector<64x64xf32>
    %105 = arith.addf %102, %104 : vector<64x64xf32>
    %c0_49 = arith.constant 0 : index
    %c0_50 = arith.constant 0 : index
    %c0_51 = arith.constant 0 : index
    %106 = vector.load %arg8[%c0_49, %c0_50, %c0_51] : memref<2x64x448xbf16, #tpu.memory_space<vmem>>, vector<1x64x448xbf16>
    %107 = vector.shape_cast %106 : vector<1x64x448xbf16> to vector<64x448xbf16>
    %108 = arith.truncf %9 : vector<64x64xf32> to vector<64x64xbf16>
    %cst_52 = arith.constant dense<0.000000e+00> : vector<64x448xf32>
    %109 = tpu.matmul %108, %107, %cst_52 {dimension_numbers = #tpu.dot_dimension_numbers<[1], [0], [0], [1], [0, 0, 1, 1], [], []>} : vector<64x64xbf16>, vector<64x448xbf16>, vector<64x448xf32> -> vector<64x448xf32>
    %c1_53 = arith.constant 1 : index
    %c0_54 = arith.constant 0 : index
    %c0_55 = arith.constant 0 : index
    %110 = vector.load %arg8[%c1_53, %c0_54, %c0_55] : memref<2x64x448xbf16, #tpu.memory_space<vmem>>, vector<1x64x448xbf16>
    %111 = vector.shape_cast %110 : vector<1x64x448xbf16> to vector<64x448xbf16>
    %112 = arith.truncf %105 : vector<64x64xf32> to vector<64x64xbf16>
    %cst_56 = arith.constant dense<0.000000e+00> : vector<64x448xf32>
    %113 = tpu.matmul %112, %111, %cst_56 {dimension_numbers = #tpu.dot_dimension_numbers<[1], [0], [0], [1], [0, 0, 1, 1], [], []>} : vector<64x64xbf16>, vector<64x448xbf16>, vector<64x448xf32> -> vector<64x448xf32>
    %114 = arith.addf %109, %113 : vector<64x448xf32>
    %c0_57 = arith.constant 0 : index
    %c0_58 = arith.constant 0 : index
    %115 = vector.load %arg9[%c0_57, %c0_58] : memref<1x448xf32, #tpu.memory_space<vmem>>, vector<1x448xf32>
    %116 = vector.broadcast %115 : vector<1x448xf32> to vector<64x448xf32>
    %117 = arith.addf %114, %116 : vector<64x448xf32>
    %118 = vector.shape_cast %117 : vector<64x448xf32> to vector<1x64x448xf32>
    %119 = tpu.transpose %118, [0, 2, 1] : vector<1x64x448xf32> -> vector<1x448x64xf32>
    %c0_59 = arith.constant 0 : index
    %c0_60 = arith.constant 0 : index
    %c0_61 = arith.constant 0 : index
    %120 = vector.load %arg1[%c0_59, %c0_60, %c0_61] : memref<1x448x64xf32, #tpu.memory_space<vmem>>, vector<1x448x64xf32>
    %121 = arith.addf %120, %119 : vector<1x448x64xf32>
    %cst_62 = arith.constant 0.000000e+00 : f32
    %122 = vector.broadcast %cst_62 : f32 to vector<1x448x64xf32>
    %123 = arith.maximumf %121, %122 : vector<1x448x64xf32>
    %c0_63 = arith.constant 0 : index
    %c0_64 = arith.constant 0 : index
    %c0_65 = arith.constant 0 : index
    %124 = vector.load %arg10[%c0_63, %c0_64, %c0_65] : memref<1x448x64xf32, #tpu.memory_space<vmem>>, vector<1x448x64xf32>
    tpu.vector_store %arg10[%c0_63, %c0_64, %c0_65], %123 {strides = array<i32>} : memref<1x448x64xf32, #tpu.memory_space<vmem>>, vector<1x448x64xf32>,
    return
  }
  func.func @transform_0(%arg0: i32) -> (i32, i32, i32) {
    %c0_i32 = arith.constant 0 : i32
    %c0_i32_0 = arith.constant 0 : i32
    %c0_i32_1 = arith.constant 0 : i32
    return %arg0, %c0_i32, %c0_i32_0 : i32, i32, i32
  }
  func.func @transform_1(%arg0: i32) -> (i32, i32) {
    %c0_i32 = arith.constant 0 : i32
    %c0_i32_0 = arith.constant 0 : i32
    %c0_i32_1 = arith.constant 0 : i32
    return %c0_i32, %c0_i32_0 : i32, i32
  }
  func.func @transform_2(%arg0: i32) -> (i32, i32) {
    %c0_i32 = arith.constant 0 : i32
    %c0_i32_0 = arith.constant 0 : i32
    %c0_i32_1 = arith.constant 0 : i32
    return %c0_i32, %c0_i32_0 : i32, i32
  }
  func.func @transform_3(%arg0: i32) -> (i32, i32, i32) {
    %c0_i32 = arith.constant 0 : i32
    %c0_i32_0 = arith.constant 0 : i32
    %c0_i32_1 = arith.constant 0 : i32
    %c0_i32_2 = arith.constant 0 : i32
    return %c0_i32, %c0_i32_0, %c0_i32_1 : i32, i32, i32
  }
  func.func @transform_4(%arg0: i32) -> (i32, i32) {
    %c0_i32 = arith.constant 0 : i32
    %c0_i32_0 = arith.constant 0 : i32
    %c0_i32_1 = arith.constant 0 : i32
    return %c0_i32, %c0_i32_0 : i32, i32
  }
  func.func @transform_5(%arg0: i32) -> (i32, i32, i32) {
    %c0_i32 = arith.constant 0 : i32
    %c0_i32_0 = arith.constant 0 : i32
    %c0_i32_1 = arith.constant 0 : i32
    %c0_i32_2 = arith.constant 0 : i32
    return %c0_i32, %c0_i32_0, %c0_i32_1 : i32, i32, i32
  }
  func.func @transform_6(%arg0: i32) -> (i32, i32) {
    %c0_i32 = arith.constant 0 : i32
    %c0_i32_0 = arith.constant 0 : i32
    %c0_i32_1 = arith.constant 0 : i32
    return %c0_i32, %c0_i32_0 : i32, i32
  }
  func.func @transform_7(%arg0: i32) -> (i32, i32, i32) {
    %c0_i32 = arith.constant 0 : i32
    %c0_i32_0 = arith.constant 0 : i32
    %c0_i32_1 = arith.constant 0 : i32
    %c0_i32_2 = arith.constant 0 : i32
    return %c0_i32, %c0_i32_0, %c0_i32_1 : i32, i32, i32
  }
  func.func @transform_8(%arg0: i32) -> (i32, i32) {
    %c0_i32 = arith.constant 0 : i32
    %c0_i32_0 = arith.constant 0 : i32
    %c0_i32_1 = arith.constant 0 : i32
    return %c0_i32, %c0_i32_0 : i32, i32
  }
  func.func @transform_9(%arg0: i32) -> (i32, i32, i32) {
    %c0_i32 = arith.constant 0 : i32
    %c0_i32_0 = arith.constant 0 : i32
    %c0_i32_1 = arith.constant 0 : i32
    return %arg0, %c0_i32, %c0_i32_0 : i32, i32, i32
  }
}

</mosaic_0001>

<llo_original>
// kernel: tpu_custom_call.1
$region0: #{tpu_custom_call.1}
  #allocation0 [shape = 'u32[]', space=smem, size = 0x4, offset = 0x4, fixed_abs, tag = 'smem constant byte address 0x4 - core index']
  #allocation1 [shape = 'u32[144,128]{1,0:T(1,128)}', space=vmem, size = 0x12000, scoped, tag = 'internal scratch']
  %s0 = inlined_call_operand.vmem [shape: f32[2,448,64], index: 0, kind: input, shape index: {}]
  %s1 = inlined_call_operand.vmem [shape: bf16[448,128], index: 1, kind: input, shape index: {}]
  %s2 = inlined_call_operand.vmem [shape: f32[1,128], index: 2, kind: input, shape index: {}]
  %s3 = inlined_call_operand.vmem [shape: bf16[3,64,64], index: 3, kind: input, shape index: {}]
  %s4 = inlined_call_operand.vmem [shape: f32[1,64], index: 4, kind: input, shape index: {}]
  %s5 = inlined_call_operand.vmem [shape: bf16[3,64,64], index: 5, kind: input, shape index: {}]
  %s6 = inlined_call_operand.vmem [shape: f32[1,64], index: 6, kind: input, shape index: {}]
  %s7 = inlined_call_operand.vmem [shape: bf16[2,64,448], index: 7, kind: input, shape index: {}]
  %s8 = inlined_call_operand.vmem [shape: f32[1,448], index: 8, kind: input, shape index: {}]
  %s9 = inlined_call_operand.vmem [shape: f32[2,448,64], index: 9, kind: output, shape index: {}]
  %s10 = sld [smem:[#allocation0]]
  $region69: #{tpu_custom_call.1} parent=0
    _
  %s12 = ssub.s32 1, %s10
  %s13 = scalar_select 0, %s12, %s10
  loop: start=0, step=1, limit=4
  $region2: #{tpu_custom_call.1} parent=0 // loop_pre_header
    _
  $region3: #{tpu_custom_call.1} parent=0 // loop_header
    %s15 = sphi 0, %s19
    %p16 = scmp.ge.s32.totalorder %s15, 4
    %s25 = sphi 0, %s27
    %s28 = sphi 0, %s25
    %s29 = sphi 0, %s28
    %s45 = sphi 0, %s29
    %s49 = sphi 0, %s49
    %s51 = sphi 0, %s49
    %s52 = sphi 0, %s51
    %s66 = sphi 0, %s52
    %s70 = sphi 0, %s70
    %s72 = sphi 0, %s70
    %s73 = sphi 0, %s72
    %s87 = sphi 0, %s73
    %s91 = sphi 0, %s91
    %s93 = sphi 0, %s91
    %s94 = sphi 0, %s93
    %s108 = sphi 0, %s94
    %s112 = sphi 0, %s112
    %s114 = sphi 0, %s112
    %s115 = sphi 0, %s114
    %s129 = sphi 0, %s115
    %s133 = sphi 0, %s133
    %s135 = sphi 0, %s133
    %s136 = sphi 0, %s135
    %s150 = sphi 0, %s136
    %s154 = sphi 0, %s154
    %s156 = sphi 0, %s154
    %s157 = sphi 0, %s156
    %s171 = sphi 0, %s157
    %s175 = sphi 0, %s175
    %s177 = sphi 0, %s175
    %s178 = sphi 0, %s177
    %s192 = sphi 0, %s178
    %s196 = sphi 0, %s196
    %s198 = sphi 0, %s196
    %s199 = sphi 0, %s198
    %s213 = sphi 0, %s199
    %s219 = sphi 0, %s221
    %s222 = sphi 0, %s219
    %s223 = sphi 0, %s222
    %s239 = sphi 0, %s223
  $region4: #{tpu_custom_call.1} parent=0 // loop_header_branch
    %18 = sbr.rel (%p16) target = $region8
  $region5: #{tpu_custom_call.1} parent=0 // loop_body
    %s20 = ssub.s32 %s15, 1
    %s21 = ssub.s32 %s15, 2
    %s22 = sadd.s32 %s15, 1
    %s23 = ssub.s32 %s15, %s22
    %p24 = scmp.eq.s32.totalorder %s23, 0
    %s26 = sadd.s32 %s25, 1
    %s27 = scalar_select %p24, %s25, %s26
    %p30 = pneg %p24
    %p31 = scmp.eq.s32.totalorder %s15, 1
    %p32 = por %p30, %p31
    %p33 = scmp.ne.s32.totalorder %s25, %s28
    %p34 = scmp.eq.s32.totalorder %s15, 0
    %p35 = por %p33, %p34
    %p36 = scmp.ne.s32.totalorder %s25, %s28
    %p37 = scmp.eq.s32.totalorder %s20, 1
    %p38 = por %p36, %p37
    %p39 = scmp.ne.s32.totalorder %s28, %s29
    %p40 = scmp.eq.s32.totalorder %s20, 0
    %p41 = por %p39, %p40
    %p42 = scmp.ne.s32.totalorder %s28, %s29
    %p43 = scmp.eq.s32.totalorder %s21, 1
    %p44 = por %p42, %p43
    %p46 = scmp.ne.s32.totalorder %s29, %s45
    %p47 = scmp.eq.s32.totalorder %s21, 0
    %p48 = por %p46, %p47
    %s50 = sadd.s32 %s49, 1
    %p53 = scmp.eq.s32.totalorder %s15, 1
    %p54 = scmp.ne.s32.totalorder %s49, %s51
    %p55 = scmp.eq.s32.totalorder %s15, 0
    %p56 = por %p54, %p55
    %p57 = scmp.ne.s32.totalorder %s49, %s51
    %p58 = scmp.eq.s32.totalorder %s20, 1
    %p59 = por %p57, %p58
    %p60 = scmp.ne.s32.totalorder %s51, %s52
    %p61 = scmp.eq.s32.totalorder %s20, 0
    %p62 = por %p60, %p61
    %p63 = scmp.ne.s32.totalorder %s51, %s52
    %p64 = scmp.eq.s32.totalorder %s21, 1
    %p65 = por %p63, %p64
    %p67 = scmp.ne.s32.totalorder %s52, %s66
    %p68 = scmp.eq.s32.totalorder %s21, 0
    %p69 = por %p67, %p68
    %s71 = sadd.s32 %s70, 1
    %p74 = scmp.eq.s32.totalorder %s15, 1
    %p75 = scmp.ne.s32.totalorder %s70, %s72
    %p76 = scmp.eq.s32.totalorder %s15, 0
    %p77 = por %p75, %p76
    %p78 = scmp.ne.s32.totalorder %s70, %s72
    %p79 = scmp.eq.s32.totalorder %s20, 1
    %p80 = por %p78, %p79
    %p81 = scmp.ne.s32.totalorder %s72, %s73
    %p82 = scmp.eq.s32.totalorder %s20, 0
    %p83 = por %p81, %p82
    %p84 = scmp.ne.s32.totalorder %s72, %s73
    %p85 = scmp.eq.s32.totalorder %s21, 1
    %p86 = por %p84, %p85
    %p88 = scmp.ne.s32.totalorder %s73, %s87
    %p89 = scmp.eq.s32.totalorder %s21, 0
    %p90 = por %p88, %p89
    %s92 = sadd.s32 %s91, 1
    %p95 = scmp.eq.s32.totalorder %s15, 1
    %p96 = scmp.ne.s32.totalorder %s91, %s93
    %p97 = scmp.eq.s32.totalorder %s15, 0
    %p98 = por %p96, %p97
    %p99 = scmp.ne.s32.totalorder %s91, %s93
    %p100 = scmp.eq.s32.totalorder %s20, 1
    %p101 = por %p99, %p100
    %p102 = scmp.ne.s32.totalorder %s93, %s94
    %p103 = scmp.eq.s32.totalorder %s20, 0
    %p104 = por %p102, %p103
    %p105 = scmp.ne.s32.totalorder %s93, %s94
    %p106 = scmp.eq.s32.totalorder %s21, 1
    %p107 = por %p105, %p106
    %p109 = scmp.ne.s32.totalorder %s94, %s108
    %p110 = scmp.eq.s32.totalorder %s21, 0
    %p111 = por %p109, %p110
    %s113 = sadd.s32 %s112, 1
    %p116 = scmp.eq.s32.totalorder %s15, 1
    %p117 = scmp.ne.s32.totalorder %s112, %s114
    %p118 = scmp.eq.s32.totalorder %s15, 0
    %p119 = por %p117, %p118
    %p120 = scmp.ne.s32.totalorder %s112, %s114
    %p121 = scmp.eq.s32.totalorder %s20, 1
    %p122 = por %p120, %p121
    %p123 = scmp.ne.s32.totalorder %s114, %s115
    %p124 = scmp.eq.s32.totalorder %s20, 0
    %p125 = por %p123, %p124
    %p126 = scmp.ne.s32.totalorder %s114, %s115
    %p127 = scmp.eq.s32.totalorder %s21, 1
    %p128 = por %p126, %p127
    %p130 = scmp.ne.s32.totalorder %s115, %s129
    %p131 = scmp.eq.s32.totalorder %s21, 0
    %p132 = por %p130, %p131
    %s134 = sadd.s32 %s133, 1
    %p137 = scmp.eq.s32.totalorder %s15, 1
    %p138 = scmp.ne.s32.totalorder %s133, %s135
    %p139 = scmp.eq.s32.totalorder %s15, 0
    %p140 = por %p138, %p139
    %p141 = scmp.ne.s32.totalorder %s133, %s135
    %p142 = scmp.eq.s32.totalorder %s20, 1
    %p143 = por %p141, %p142
    %p144 = scmp.ne.s32.totalorder %s135, %s136
    %p145 = scmp.eq.s32.totalorder %s20, 0
    %p146 = por %p144, %p145
    %p147 = scmp.ne.s32.totalorder %s135, %s136
    %p148 = scmp.eq.s32.totalorder %s21, 1
    %p149 = por %p147, %p148
    %p151 = scmp.ne.s32.totalorder %s136, %s150
    %p152 = scmp.eq.s32.totalorder %s21, 0
    %p153 = por %p151, %p152
    %s155 = sadd.s32 %s154, 1
    %p158 = scmp.eq.s32.totalorder %s15, 1
    %p159 = scmp.ne.s32.totalorder %s154, %s156
    %p160 = scmp.eq.s32.totalorder %s15, 0
    %p161 = por %p159, %p160
    %p162 = scmp.ne.s32.totalorder %s154, %s156
    %p163 = scmp.eq.s32.totalorder %s20, 1
    %p164 = por %p162, %p163
    %p165 = scmp.ne.s32.totalorder %s156, %s157
    %p166 = scmp.eq.s32.totalorder %s20, 0
    %p167 = por %p165, %p166
    %p168 = scmp.ne.s32.totalorder %s156, %s157
    %p169 = scmp.eq.s32.totalorder %s21, 1
    %p170 = por %p168, %p169
    %p172 = scmp.ne.s32.totalorder %s157, %s171
    %p173 = scmp.eq.s32.totalorder %s21, 0
    %p174 = por %p172, %p173
    %s176 = sadd.s32 %s175, 1
    %p179 = scmp.eq.s32.totalorder %s15, 1
    %p180 = scmp.ne.s32.totalorder %s175, %s177
    %p181 = scmp.eq.s32.totalorder %s15, 0
    %p182 = por %p180, %p181
    %p183 = scmp.ne.s32.totalorder %s175, %s177
    %p184 = scmp.eq.s32.totalorder %s20, 1
    %p185 = por %p183, %p184
    %p186 = scmp.ne.s32.totalorder %s177, %s178
    %p187 = scmp.eq.s32.totalorder %s20, 0
    %p188 = por %p186, %p187
    %p189 = scmp.ne.s32.totalorder %s177, %s178
    %p190 = scmp.eq.s32.totalorder %s21, 1
    %p191 = por %p189, %p190
    %p193 = scmp.ne.s32.totalorder %s178, %s192
    %p194 = scmp.eq.s32.totalorder %s21, 0
    %p195 = por %p193, %p194
    %s197 = sadd.s32 %s196, 1
    %p200 = scmp.eq.s32.totalorder %s15, 1
    %p201 = scmp.ne.s32.totalorder %s196, %s198
    %p202 = scmp.eq.s32.totalorder %s15, 0
    %p203 = por %p201, %p202
    %p204 = scmp.ne.s32.totalorder %s196, %s198
    %p205 = scmp.eq.s32.totalorder %s20, 1
    %p206 = por %p204, %p205
    %p207 = scmp.ne.s32.totalorder %s198, %s199
    %p208 = scmp.eq.s32.totalorder %s20, 0
    %p209 = por %p207, %p208
    %p210 = scmp.ne.s32.totalorder %s198, %s199
    %p211 = scmp.eq.s32.totalorder %s21, 1
    %p212 = por %p210, %p211
    %p214 = scmp.ne.s32.totalorder %s199, %s213
    %p215 = scmp.eq.s32.totalorder %s21, 0
    %p216 = por %p214, %p215
    %s217 = ssub.s32 %s15, %s22
    %p218 = scmp.eq.s32.totalorder %s217, 0
    %s220 = sadd.s32 %s219, 1
    %s221 = scalar_select %p218, %s219, %s220
    %p224 = pneg %p218
    %p225 = scmp.eq.s32.totalorder %s15, 1
    %p226 = por %p224, %p225
    %p227 = scmp.ne.s32.totalorder %s219, %s222
    %p228 = scmp.eq.s32.totalorder %s15, 0
    %p229 = por %p227, %p228
    %p230 = scmp.ne.s32.totalorder %s219, %s222
    %p231 = scmp.eq.s32.totalorder %s20, 1
    %p232 = por %p230, %p231
    %p233 = scmp.ne.s32.totalorder %s222, %s223
    %p234 = scmp.eq.s32.totalorder %s20, 0
    %p235 = por %p233, %p234
    %p236 = scmp.ne.s32.totalorder %s222, %s223
    %p237 = scmp.eq.s32.totalorder %s21, 1
    %p238 = por %p236, %p237
    %p240 = scmp.ne.s32.totalorder %s223, %s239
    %p241 = scmp.eq.s32.totalorder %s21, 0
    %p242 = por %p240, %p241
    %p243 = scmp.le.s32.totalorder 1, %s15
    %p244 = scmp.lt.s32.totalorder %s15, 3
    %p245 = pnand %p243, %p244
    %p246 = pneg %p245
    // Predicated region
    $region9: #{tpu_custom_call.1} parent=5 // pred_check
      _
    $region10: #{tpu_custom_call.1} parent=5 // pred_check_branch
      %248 = sbr.rel (%p245) target = $region12
    $region11: #{tpu_custom_call.1} parent=5 // pred_region
      %s249 = ssub.s32 %s15, 1
      // Predicated region
      $region13: #{tpu_custom_call.1} parent=11 // pred_check
        %p250 = pneg %p62
      $region14: #{tpu_custom_call.1} parent=11 // pred_check_branch
        %252 = sbr.rel (%p250) target = $region16
      $region15: #{tpu_custom_call.1} parent=11 // pred_region
        _
      $region16: #{tpu_custom_call.1} parent=11 // pred_fallthru
        _
      // Predicated region
      $region17: #{tpu_custom_call.1} parent=11 // pred_check
        %p253 = pneg %p83
      $region18: #{tpu_custom_call.1} parent=11 // pred_check_branch
        %255 = sbr.rel (%p253) target = $region20
      $region19: #{tpu_custom_call.1} parent=11 // pred_region
        _
      $region20: #{tpu_custom_call.1} parent=11 // pred_fallthru
        _
      // Predicated region
      $region21: #{tpu_custom_call.1} parent=11 // pred_check
        %p256 = pneg %p104
      $region22: #{tpu_custom_call.1} parent=11 // pred_check_branch
        %258 = sbr.rel (%p256) target = $region24
      $region23: #{tpu_custom_call.1} parent=11 // pred_region
        _
      $region24: #{tpu_custom_call.1} parent=11 // pred_fallthru
        _
      // Predicated region
      $region25: #{tpu_custom_call.1} parent=11 // pred_check
        %p259 = pneg %p125
      $region26: #{tpu_custom_call.1} parent=11 // pred_check_branch
        %261 = sbr.rel (%p259) target = $region28
      $region27: #{tpu_custom_call.1} parent=11 // pred_region
        _
      $region28: #{tpu_custom_call.1} parent=11 // pred_fallthru
        _
      // Predicated region
      $region29: #{tpu_custom_call.1} parent=11 // pred_check
        %p262 = pneg %p146
      $region30: #{tpu_custom_call.1} parent=11 // pred_check_branch
        %264 = sbr.rel (%p262) target = $region32
      $region31: #{tpu_custom_call.1} parent=11 // pred_region
        _
      $region32: #{tpu_custom_call.1} parent=11 // pred_fallthru
        _
      // Predicated region
      $region33: #{tpu_custom_call.1} parent=11 // pred_check
        %p265 = pneg %p167
      $region34: #{tpu_custom_call.1} parent=11 // pred_check_branch
        %267 = sbr.rel (%p265) target = $region36
      $region35: #{tpu_custom_call.1} parent=11 // pred_region
        _
      $region36: #{tpu_custom_call.1} parent=11 // pred_fallthru
        _
      // Predicated region
      $region37: #{tpu_custom_call.1} parent=11 // pred_check
        %p268 = pneg %p188
      $region38: #{tpu_custom_call.1} parent=11 // pred_check_branch
        %270 = sbr.rel (%p268) target = $region40
      $region39: #{tpu_custom_call.1} parent=11 // pred_region
        _
      $region40: #{tpu_custom_call.1} parent=11 // pred_fallthru
        _
      // Predicated region
      $region41: #{tpu_custom_call.1} parent=11 // pred_check
        %p271 = pneg %p209
      $region42: #{tpu_custom_call.1} parent=11 // pred_check_branch
        %273 = sbr.rel (%p271) target = $region44
      $region43: #{tpu_custom_call.1} parent=11 // pred_region
        _
      $region44: #{tpu_custom_call.1} parent=11 // pred_fallthru
        _
    $region12: #{tpu_custom_call.1} parent=5 // pred_fallthru
      _
    %p274 = scmp.lt.s32.totalorder %s15, 2
    // Predicated region
    $region45: #{tpu_custom_call.1} parent=5 // pred_check
      %p275 = pneg %p274
    $region46: #{tpu_custom_call.1} parent=5 // pred_check_branch
      %277 = sbr.rel (%p275) target = $region48
    $region47: #{tpu_custom_call.1} parent=5 // pred_region
      // Predicated region
      $region49: #{tpu_custom_call.1} parent=47 // pred_check
        %p278 = pneg %p35
      $region50: #{tpu_custom_call.1} parent=47 // pred_check_branch
        %280 = sbr.rel (%p278) target = $region52
      $region51: #{tpu_custom_call.1} parent=47 // pred_region
        %p281 = scmp.lt.s32.totalorder %s15, 1
        %s282 = scalar_select %p281, %s15, 1
        %s283 = smul.addr %s282, 56
        %s284 = smul.addr %s283, 8
        %s285 = scalar_lea.vmem %s0, %s284
      $region52: #{tpu_custom_call.1} parent=47 // pred_fallthru
        _
    $region48: #{tpu_custom_call.1} parent=5 // pred_fallthru
      _
    %p286 = scmp.le.s32.totalorder 1, %s15
    %p287 = scmp.lt.s32.totalorder %s15, 3
    %p288 = pnand %p286, %p287
    %p289 = pneg %p288
    // Predicated region
    $region53: #{tpu_custom_call.1} parent=5 // pred_check
      _
    $region54: #{tpu_custom_call.1} parent=5 // pred_check_branch
      %291 = sbr.rel (%p288) target = $region56
    $region55: #{tpu_custom_call.1} parent=5 // pred_region
      %s292 = ssub.s32 %s15, 1
      %p293 = scmp.lt.s32.totalorder %s20, 1
      %s294 = scalar_select %p293, %s20, 1
      %s295 = smul.addr %s294, 56
      %s296 = smul.addr %s295, 8
      %s297 = scalar_lea.vmem %s0, %s296
      %p298 = pneg %p41
      %p299 = pneg %p38
      %p300 = pneg %p62
      %p301 = pneg %p59
      %p302 = pneg %p83
      %p303 = pneg %p80
      %p304 = pneg %p104
      %p305 = pneg %p101
      %p306 = pneg %p125
      %p307 = pneg %p122
      %p308 = pneg %p146
      %p309 = pneg %p143
      %p310 = pneg %p167
      %p311 = pneg %p164
      %p312 = pneg %p188
      %p313 = pneg %p185
      %p314 = pneg %p209
      %p315 = pneg %p206
      %p316 = pneg %p235
      %p317 = pneg %p232
      %p318 = scmp.lt.s32.totalorder %s20, 1
      %s319 = scalar_select %p318, %s20, 1
      %s320 = smul.addr %s319, 56
      %s321 = smul.addr %s320, 8
      %s322 = scalar_lea.vmem %s9, %s321
      %p323 = scmp.lt.s32.totalorder %s20, 1
      %s324 = scalar_select %p323, %s20, 1
      %s325 = smul.addr %s324, 56
      %s326 = smul.addr %s325, 8
      %s327 = scalar_lea.vmem %s0, %s326
      %p328 = scmp.lt.s32.totalorder %s20, 1
      %s329 = scalar_select %p328, %s20, 1
      %s330 = smul.addr %s329, 56
      %s331 = smul.addr %s330, 8
      %s332 = scalar_lea.vmem %s9, %s331
      %v334 = vld [vmem:[%s327] sm:$0xff]
      %v335 = vld [vmem:[%s327 + $0x8] sm:$0xff]
      %v336 = vld [vmem:[%s327 + $0x10] sm:$0xff]
      %v337 = vld [vmem:[%s327 + $0x18] sm:$0xff]
      %v338 = vld [vmem:[%s327 + $0x20] sm:$0xff]
      %v339 = vld [vmem:[%s327 + $0x28] sm:$0xff]
      %v340 = vld [vmem:[%s327 + $0x30] sm:$0xff]
      %v341 = vld [vmem:[%s327 + $0x38] sm:$0xff]
      %v342 = vld [vmem:[%s327 + $0x40] sm:$0xff]
      %v343 = vld [vmem:[%s327 + $0x48] sm:$0xff]
      %v344 = vld [vmem:[%s327 + $0x50] sm:$0xff]
      %v345 = vld [vmem:[%s327 + $0x58] sm:$0xff]
      %v346 = vld [vmem:[%s327 + $0x60] sm:$0xff]
      %v347 = vld [vmem:[%s327 + $0x68] sm:$0xff]
      %v348 = vld [vmem:[%s327 + $0x70] sm:$0xff]
      %v349 = vld [vmem:[%s327 + $0x78] sm:$0xff]
      %v350 = vld [vmem:[%s327 + $0x80] sm:$0xff]
      %v351 = vld [vmem:[%s327 + $0x88] sm:$0xff]
      %v352 = vld [vmem:[%s327 + $0x90] sm:$0xff]
      %v353 = vld [vmem:[%s327 + $0x98] sm:$0xff]
      %v354 = vld [vmem:[%s327 + $0xa0] sm:$0xff]
      %v355 = vld [vmem:[%s327 + $0xa8] sm:$0xff]
      %v356 = vld [vmem:[%s327 + $0xb0] sm:$0xff]
      %v357 = vld [vmem:[%s327 + $0xb8] sm:$0xff]
      %v358 = vld [vmem:[%s327 + $0xc0] sm:$0xff]
      %v359 = vld [vmem:[%s327 + $0xc8] sm:$0xff]
      %v360 = vld [vmem:[%s327 + $0xd0] sm:$0xff]
      %v361 = vld [vmem:[%s327 + $0xd8] sm:$0xff]
      %v362 = vld [vmem:[%s327 + $0xe0] sm:$0xff]
      %v363 = vld [vmem:[%s327 + $0xe8] sm:$0xff]
      %v364 = vld [vmem:[%s327 + $0xf0] sm:$0xff]
      %v365 = vld [vmem:[%s327 + $0xf8] sm:$0xff]
      %v366 = vld [vmem:[%s327 + $0x100] sm:$0xff]
      %v367 = vld [vmem:[%s327 + $0x108] sm:$0xff]
      %v368 = vld [vmem:[%s327 + $0x110] sm:$0xff]
      %v369 = vld [vmem:[%s327 + $0x118] sm:$0xff]
      %v370 = vld [vmem:[%s327 + $0x120] sm:$0xff]
      %v371 = vld [vmem:[%s327 + $0x128] sm:$0xff]
      %v372 = vld [vmem:[%s327 + $0x130] sm:$0xff]
      %v373 = vld [vmem:[%s327 + $0x138] sm:$0xff]
      %v374 = vld [vmem:[%s327 + $0x140] sm:$0xff]
      %v375 = vld [vmem:[%s327 + $0x148] sm:$0xff]
      %v376 = vld [vmem:[%s327 + $0x150] sm:$0xff]
      %v377 = vld [vmem:[%s327 + $0x158] sm:$0xff]
      %v378 = vld [vmem:[%s327 + $0x160] sm:$0xff]
      %v379 = vld [vmem:[%s327 + $0x168] sm:$0xff]
      %v380 = vld [vmem:[%s327 + $0x170] sm:$0xff]
      %v381 = vld [vmem:[%s327 + $0x178] sm:$0xff]
      %v382 = vld [vmem:[%s327 + $0x180] sm:$0xff]
      %v383 = vld [vmem:[%s327 + $0x188] sm:$0xff]
      %v384 = vld [vmem:[%s327 + $0x190] sm:$0xff]
      %v385 = vld [vmem:[%s327 + $0x198] sm:$0xff]
      %v386 = vld [vmem:[%s327 + $0x1a0] sm:$0xff]
      %v387 = vld [vmem:[%s327 + $0x1a8] sm:$0xff]
      %v388 = vld [vmem:[%s327 + $0x1b0] sm:$0xff]
      %v389 = vld [vmem:[%s327 + $0x1b8] sm:$0xff]
      %390 = vxpose.xlu0.b32.start [1/16] %v334, 128
      %391 = vxpose.xlu0.b32.cont [2/16] %v335, 128
      %392 = vxpose.xlu0.b32.cont [3/16] %v336, 128
      %393 = vxpose.xlu0.b32.cont [4/16] %v337, 128
      %394 = vxpose.xlu0.b32.cont [5/16] %v338, 128
      %395 = vxpose.xlu0.b32.cont [6/16] %v339, 128
      %396 = vxpose.xlu0.b32.cont [7/16] %v340, 128
      %397 = vxpose.xlu0.b32.cont [8/16] %v341, 128
      %398 = vxpose.xlu0.b32.cont [9/16] %v342, 128
      %399 = vxpose.xlu0.b32.cont [10/16] %v343, 128
      %400 = vxpose.xlu0.b32.cont [11/16] %v344, 128
      %401 = vxpose.xlu0.b32.cont [12/16] %v345, 128
      %402 = vxpose.xlu0.b32.cont [13/16] %v346, 128
      %403 = vxpose.xlu0.b32.cont [14/16] %v347, 128
      %404 = vxpose.xlu0.b32.cont [15/16] %v348, 128
      %405 = vxpose.xlu0.b32.end [16/16] %v349, 128
      %v406 = vpop.trf.xlu0
      %v407 = vpop.trf.xlu0
      %v408 = vpop.trf.xlu0
      %v409 = vpop.trf.xlu0
      %v410 = vpop.trf.xlu0
      %v411 = vpop.trf.xlu0
      %v412 = vpop.trf.xlu0
      %v413 = vpop.trf.xlu0
      %v414 = vpop.trf.xlu0
      %v415 = vpop.trf.xlu0
      %v416 = vpop.trf.xlu0
      %v417 = vpop.trf.xlu0
      %v418 = vpop.trf.xlu0
      %v419 = vpop.trf.xlu0
      %v420 = vpop.trf.xlu0
      %v421 = vpop.trf.xlu0
      %422 = vxpose.xlu0.b32.start [1/16] %v350, 128
      %423 = vxpose.xlu0.b32.cont [2/16] %v351, 128
      %424 = vxpose.xlu0.b32.cont [3/16] %v352, 128
      %425 = vxpose.xlu0.b32.cont [4/16] %v353, 128
      %426 = vxpose.xlu0.b32.cont [5/16] %v354, 128
      %427 = vxpose.xlu0.b32.cont [6/16] %v355, 128
      %428 = vxpose.xlu0.b32.cont [7/16] %v356, 128
      %429 = vxpose.xlu0.b32.cont [8/16] %v357, 128
      %430 = vxpose.xlu0.b32.cont [9/16] %v358, 128
      %431 = vxpose.xlu0.b32.cont [10/16] %v359, 128
      %432 = vxpose.xlu0.b32.cont [11/16] %v360, 128
      %433 = vxpose.xlu0.b32.cont [12/16] %v361, 128
      %434 = vxpose.xlu0.b32.cont [13/16] %v362, 128
      %435 = vxpose.xlu0.b32.cont [14/16] %v363, 128
      %436 = vxpose.xlu0.b32.cont [15/16] %v364, 128
      %437 = vxpose.xlu0.b32.end [16/16] %v365, 128
      %v438 = vpop.trf.xlu0
      %v439 = vpop.trf.xlu0
      %v440 = vpop.trf.xlu0
      %v441 = vpop.trf.xlu0
      %v442 = vpop.trf.xlu0
      %v443 = vpop.trf.xlu0
      %v444 = vpop.trf.xlu0
      %v445 = vpop.trf.xlu0
      %v446 = vpop.trf.xlu0
      %v447 = vpop.trf.xlu0
      %v448 = vpop.trf.xlu0
      %v449 = vpop.trf.xlu0
      %v450 = vpop.trf.xlu0
      %v451 = vpop.trf.xlu0
      %v452 = vpop.trf.xlu0
      %v453 = vpop.trf.xlu0
      %454 = vxpose.xlu0.b32.start [1/16] %v366, 128
      %455 = vxpose.xlu0.b32.cont [2/16] %v367, 128
      %456 = vxpose.xlu0.b32.cont [3/16] %v368, 128
      %457 = vxpose.xlu0.b32.cont [4/16] %v369, 128
      %458 = vxpose.xlu0.b32.cont [5/16] %v370, 128
      %459 = vxpose.xlu0.b32.cont [6/16] %v371, 128
      %460 = vxpose.xlu0.b32.cont [7/16] %v372, 128
      %461 = vxpose.xlu0.b32.cont [8/16] %v373, 128
      %462 = vxpose.xlu0.b32.cont [9/16] %v374, 128
      %463 = vxpose.xlu0.b32.cont [10/16] %v375, 128
      %464 = vxpose.xlu0.b32.cont [11/16] %v376, 128
      %465 = vxpose.xlu0.b32.cont [12/16] %v377, 128
      %466 = vxpose.xlu0.b32.cont [13/16] %v378, 128
      %467 = vxpose.xlu0.b32.cont [14/16] %v379, 128
      %468 = vxpose.xlu0.b32.cont [15/16] %v380, 128
      %469 = vxpose.xlu0.b32.end [16/16] %v381, 128
      %v470 = vpop.trf.xlu0
      %v471 = vpop.trf.xlu0
      %v472 = vpop.trf.xlu0
      %v473 = vpop.trf.xlu0
      %v474 = vpop.trf.xlu0
      %v475 = vpop.trf.xlu0
      %v476 = vpop.trf.xlu0
      %v477 = vpop.trf.xlu0
      %v478 = vpop.trf.xlu0
      %v479 = vpop.trf.xlu0
      %v480 = vpop.trf.xlu0
      %v481 = vpop.trf.xlu0
      %v482 = vpop.trf.xlu0
      %v483 = vpop.trf.xlu0
      %v484 = vpop.trf.xlu0
      %v485 = vpop.trf.xlu0
      %486 = vxpose.xlu0.b32.start [1/16] %v382, 128
      %487 = vxpose.xlu0.b32.cont [2/16] %v383, 128
      %488 = vxpose.xlu0.b32.cont [3/16] %v384, 128
      %489 = vxpose.xlu0.b32.cont [4/16] %v385, 128
      %490 = vxpose.xlu0.b32.cont [5/16] %v386, 128
      %491 = vxpose.xlu0.b32.cont [6/16] %v387, 128
      %492 = vxpose.xlu0.b32.cont [7/16] %v388, 128
      %493 = vxpose.xlu0.b32.cont [8/16] %v389, 128
      %494 = vxpose.xlu0.b32.cont [9/16] 0.0, 128
      %495 = vxpose.xlu0.b32.cont [10/16] 0.0, 128
      %496 = vxpose.xlu0.b32.cont [11/16] 0.0, 128
      %497 = vxpose.xlu0.b32.cont [12/16] 0.0, 128
      %498 = vxpose.xlu0.b32.cont [13/16] 0.0, 128
      %499 = vxpose.xlu0.b32.cont [14/16] 0.0, 128
      %500 = vxpose.xlu0.b32.cont [15/16] 0.0, 128
      %501 = vxpose.xlu0.b32.end [16/16] 0.0, 128
      %v502 = vpop.trf.xlu0
      %v503 = vpop.trf.xlu0
      %v504 = vpop.trf.xlu0
      %v505 = vpop.trf.xlu0
      %v506 = vpop.trf.xlu0
      %v507 = vpop.trf.xlu0
      %v508 = vpop.trf.xlu0
      %v509 = vpop.trf.xlu0
      %v510 = vpop.trf.xlu0
      %v511 = vpop.trf.xlu0
      %v512 = vpop.trf.xlu0
      %v513 = vpop.trf.xlu0
      %v514 = vpop.trf.xlu0
      %v515 = vpop.trf.xlu0
      %v516 = vpop.trf.xlu0
      %v517 = vpop.trf.xlu0
      %v518 = vpack.c.bf16 %v407, %v406
      %v519 = vpack.c.bf16 %v439, %v438
      %v520 = vpack.c.bf16 %v471, %v470
      %v521 = vpack.c.bf16 %v503, %v502
      %v522 = vpack.c.bf16 %v409, %v408
      %v523 = vpack.c.bf16 %v441, %v440
      %v524 = vpack.c.bf16 %v473, %v472
      %v525 = vpack.c.bf16 %v505, %v504
      %v526 = vpack.c.bf16 %v411, %v410
      %v527 = vpack.c.bf16 %v443, %v442
      %v528 = vpack.c.bf16 %v475, %v474
      %v529 = vpack.c.bf16 %v507, %v506
      %v530 = vpack.c.bf16 %v413, %v412
      %v531 = vpack.c.bf16 %v445, %v444
      %v532 = vpack.c.bf16 %v477, %v476
      %v533 = vpack.c.bf16 %v509, %v508
      %v534 = vld [vmem:[%s1] sm:$0xf]
      %v535 = vld [vmem:[%s1 + $0x4] sm:$0xf]
      %v536 = vld [vmem:[%s1 + $0x8] sm:$0xf]
      %v537 = vld [vmem:[%s1 + $0xc] sm:$0xf]
      %v538 = vld [vmem:[%s1 + $0x10] sm:$0xf]
      %v539 = vld [vmem:[%s1 + $0x14] sm:$0xf]
      %v540 = vld [vmem:[%s1 + $0x18] sm:$0xf]
      %v541 = vld [vmem:[%s1 + $0x1c] sm:$0xf]
      %v542 = vld [vmem:[%s1 + $0x20] sm:$0xf]
      %v543 = vld [vmem:[%s1 + $0x24] sm:$0xf]
      %v544 = vld [vmem:[%s1 + $0x28] sm:$0xf]
      %v545 = vld [vmem:[%s1 + $0x2c] sm:$0xf]
      %v546 = vld [vmem:[%s1 + $0x30] sm:$0xf]
      %v547 = vld [vmem:[%s1 + $0x34] sm:$0xf]
      %v548 = vld [vmem:[%s1 + $0x38] sm:$0xf]
      %v549 = vld [vmem:[%s1 + $0x3c] sm:$0xf]
      %v550 = vld [vmem:[%s1 + $0x40] sm:$0xf]
      %v551 = vld [vmem:[%s1 + $0x44] sm:$0xf]
      %v552 = vld [vmem:[%s1 + $0x48] sm:$0xf]
      %v553 = vld [vmem:[%s1 + $0x4c] sm:$0xf]
      %v554 = vld [vmem:[%s1 + $0x50] sm:$0xf]
      %v555 = vld [vmem:[%s1 + $0x54] sm:$0xf]
      %v556 = vld [vmem:[%s1 + $0x58] sm:$0xf]
      %v557 = vld [vmem:[%s1 + $0x5c] sm:$0xf]
      %v558 = vld [vmem:[%s1 + $0x60] sm:$0xf]
      %v559 = vld [vmem:[%s1 + $0x64] sm:$0xf]
      %v560 = vld [vmem:[%s1 + $0x68] sm:$0xf]
      %v561 = vld [vmem:[%s1 + $0x6c] sm:$0xf]
      %v562 = vld [vmem:[%s1 + $0x70] sm:$0xf]
      %v563 = vld [vmem:[%s1 + $0x74] sm:$0xf]
      %v564 = vld [vmem:[%s1 + $0x78] sm:$0xf]
      %v565 = vld [vmem:[%s1 + $0x7c] sm:$0xf]
      %v566 = vld [vmem:[%s1 + $0x80] sm:$0xf]
      %v567 = vld [vmem:[%s1 + $0x84] sm:$0xf]
      %v568 = vld [vmem:[%s1 + $0x88] sm:$0xf]
      %v569 = vld [vmem:[%s1 + $0x8c] sm:$0xf]
      %v570 = vld [vmem:[%s1 + $0x90] sm:$0xf]
      %v571 = vld [vmem:[%s1 + $0x94] sm:$0xf]
      %v572 = vld [vmem:[%s1 + $0x98] sm:$0xf]
      %v573 = vld [vmem:[%s1 + $0x9c] sm:$0xf]
      %v574 = vld [vmem:[%s1 + $0xa0] sm:$0xf]
      %v575 = vld [vmem:[%s1 + $0xa4] sm:$0xf]
      %v576 = vld [vmem:[%s1 + $0xa8] sm:$0xf]
      %v577 = vld [vmem:[%s1 + $0xac] sm:$0xf]
      %v578 = vld [vmem:[%s1 + $0xb0] sm:$0xf]
      %v579 = vld [vmem:[%s1 + $0xb4] sm:$0xf]
      %v580 = vld [vmem:[%s1 + $0xb8] sm:$0xf]
      %v581 = vld [vmem:[%s1 + $0xbc] sm:$0xf]
      %v582 = vld [vmem:[%s1 + $0xc0] sm:$0xf]
      %v583 = vld [vmem:[%s1 + $0xc4] sm:$0xf]
      %v584 = vld [vmem:[%s1 + $0xc8] sm:$0xf]
      %v585 = vld [vmem:[%s1 + $0xcc] sm:$0xf]
      %v586 = vld [vmem:[%s1 + $0xd0] sm:$0xf]
      %v587 = vld [vmem:[%s1 + $0xd4] sm:$0xf]
      %v588 = vld [vmem:[%s1 + $0xd8] sm:$0xf]
      %v589 = vld [vmem:[%s1 + $0xdc] sm:$0xf]
      %v590 = vld [vmem:[%s2] sm:$0x1]
      %v592 = vlaneseq
      %v593 = vshrl.u32 %v592, 7
      %v594 = vsub.s32 0, %v593
      %v595 = vrot.slane %v590, %v594
      %v653 = vunpack.c.l.b16 %v534
      %v654 = vunpack.c.l.b16 %v535
      %v655 = vunpack.c.l.b16 %v536
      %v656 = vunpack.c.l.b16 %v537
      %v657 = vunpack.c.l.b16 %v538
      %v658 = vunpack.c.l.b16 %v539
      %v659 = vunpack.c.l.b16 %v540
      %v660 = vunpack.c.l.b16 %v541
      %v661 = vunpack.c.l.b16 %v542
      %v662 = vunpack.c.l.b16 %v543
      %v663 = vunpack.c.l.b16 %v544
      %v664 = vunpack.c.l.b16 %v545
      %v665 = vunpack.c.l.b16 %v546
      %v666 = vunpack.c.l.b16 %v547
      %v667 = vunpack.c.l.b16 %v548
      %v668 = vunpack.c.l.b16 %v549
      %v669 = vunpack.c.l.b16 %v550
      %v670 = vunpack.c.l.b16 %v551
      %v671 = vunpack.c.l.b16 %v552
      %v672 = vunpack.c.l.b16 %v553
      %v673 = vunpack.c.l.b16 %v554
      %v674 = vunpack.c.l.b16 %v555
      %v675 = vunpack.c.l.b16 %v556
      %v676 = vunpack.c.l.b16 %v557
      %v677 = vunpack.c.l.b16 %v558
      %v678 = vunpack.c.l.b16 %v559
      %v679 = vunpack.c.l.b16 %v560
      %v680 = vunpack.c.l.b16 %v561
      %v681 = vunpack.c.l.b16 %v562
      %v682 = vunpack.c.l.b16 %v563
      %v683 = vunpack.c.l.b16 %v564
      %v684 = vunpack.c.l.b16 %v565
      %v685 = vunpack.c.l.b16 %v566
      %v686 = vunpack.c.l.b16 %v567
      %v687 = vunpack.c.l.b16 %v568
      %v688 = vunpack.c.l.b16 %v569
      %v689 = vunpack.c.l.b16 %v570
      %v690 = vunpack.c.l.b16 %v571
      %v691 = vunpack.c.l.b16 %v572
      %v692 = vunpack.c.l.b16 %v573
      %v693 = vunpack.c.l.b16 %v574
      %v694 = vunpack.c.l.b16 %v575
      %v695 = vunpack.c.l.b16 %v576
      %v696 = vunpack.c.l.b16 %v577
      %v697 = vunpack.c.l.b16 %v578
      %v698 = vunpack.c.l.b16 %v579
      %v699 = vunpack.c.l.b16 %v580
      %v700 = vunpack.c.l.b16 %v581
      %v701 = vunpack.c.l.b16 %v582
      %v702 = vunpack.c.l.b16 %v583
      %v703 = vunpack.c.l.b16 %v584
      %v704 = vunpack.c.l.b16 %v585
      %v705 = vunpack.c.l.b16 %v586
      %v706 = vunpack.c.l.b16 %v587
      %v707 = vunpack.c.l.b16 %v588
      %v708 = vunpack.c.l.b16 %v589
      %v709 = vpack.c.b16 %v654, %v653
      %v710 = vpack.c.b16 %v656, %v655
      %v711 = vpack.c.b16 %v658, %v657
      %v712 = vpack.c.b16 %v660, %v659
      %v713 = vpack.c.b16 %v662, %v661
      %v714 = vpack.c.b16 %v664, %v663
      %v715 = vpack.c.b16 %v666, %v665
      %v716 = vpack.c.b16 %v668, %v667
      %v717 = vpack.c.b16 %v670, %v669
      %v718 = vpack.c.b16 %v672, %v671
      %v719 = vpack.c.b16 %v674, %v673
      %v720 = vpack.c.b16 %v676, %v675
      %v721 = vpack.c.b16 %v678, %v677
      %v722 = vpack.c.b16 %v680, %v679
      %v723 = vpack.c.b16 %v682, %v681
      %v724 = vpack.c.b16 %v684, %v683
      %v725 = vpack.c.b16 %v686, %v685
      %v726 = vpack.c.b16 %v688, %v687
      %v727 = vpack.c.b16 %v690, %v689
      %v728 = vpack.c.b16 %v692, %v691
      %v729 = vpack.c.b16 %v694, %v693
      %v730 = vpack.c.b16 %v696, %v695
      %v731 = vpack.c.b16 %v698, %v697
      %v732 = vpack.c.b16 %v700, %v699
      %v733 = vpack.c.b16 %v702, %v701
      %v734 = vpack.c.b16 %v704, %v703
      %v735 = vpack.c.b16 %v706, %v705
      %v736 = vpack.c.b16 %v708, %v707
      %vm765 = vcmask 523264
      %v767 = vsel %vm765, %v521, 0
      %v770 = vsel %vm765, %v525, 0
      %v773 = vsel %vm765, %v529, 0
      %v776 = vsel %vm765, %v533, 0
      %778 = vmatprep.subr.bf16.mxu0 0
      %779 = vmatpush1.bf16.msra.mxu0 %v716
      %780 = vmatprep.subr.bf16.mxu0 0
      %781 = vmatpush1.bf16.msra.mxu0 %v715
      %782 = vmatprep.subr.bf16.mxu0 0
      %783 = vmatpush1.bf16.msra.mxu0 %v714
      %784 = vmatprep.subr.bf16.mxu0 0
      %785 = vmatpush1.bf16.msra.mxu0 %v713
      %786 = vmatprep.subr.bf16.mxu0 0
      %787 = vmatpush1.bf16.msra.mxu0 %v712
      %788 = vmatprep.subr.bf16.mxu0 0
      %789 = vmatpush1.bf16.msra.mxu0 %v711
      %790 = vmatprep.subr.bf16.mxu0 0
      %791 = vmatpush1.bf16.msra.mxu0 %v710
      %792 = vmatprep.subr.bf16.mxu0 0
      %793 = vmatpush1.bf16.msra.mxu0 %v709
      %794 = vmatprep.subr.bf16.mxu0 0
      %795 = vmatpush2.bf16.msra.mxu0 %v724
      %796 = vmatprep.subr.bf16.mxu0 0
      %797 = vmatpush2.bf16.msra.mxu0 %v723
      %798 = vmatprep.subr.bf16.mxu0 0
      %799 = vmatpush2.bf16.msra.mxu0 %v722
      %800 = vmatprep.subr.bf16.mxu0 0
      %801 = vmatpush2.bf16.msra.mxu0 %v721
      %802 = vmatprep.subr.bf16.mxu0 0
      %803 = vmatpush2.bf16.msra.mxu0 %v720
      %804 = vmatprep.subr.bf16.mxu0 0
      %805 = vmatpush2.bf16.msra.mxu0 %v719
      %806 = vmatprep.subr.bf16.mxu0 0
      %807 = vmatpush2.bf16.msra.mxu0 %v718
      %808 = vmatprep.subr.bf16.mxu0 0
      %809 = vmatpush2.bf16.msra.mxu0 %v717
      %810 = vmatprep.mubr.bf16.mxu0 %v519
      %811 = vmatmul.mubr.bf16.gmra.mxu0 %v518
      %v812 = vpop.f32.mrf.mxu0
      %v813 = vadd.f32 %v595, %v812
      %v814 = vpop.f32.mrf.mxu0
      %v815 = vpop.f32.mrf.mxu0
      %v816 = vadd.f32 %v595, %v815
      %v817 = vpop.f32.mrf.mxu0
      %818 = vmatprep.mubr.bf16.mxu0 %v523
      %819 = vmatmul.mubr.bf16.gmra.mxu0 %v522
      %v820 = vpop.f32.mrf.mxu0
      %v821 = vadd.f32 %v595, %v820
      %v822 = vpop.f32.mrf.mxu0
      %v823 = vpop.f32.mrf.mxu0
      %v824 = vadd.f32 %v595, %v823
      %v825 = vpop.f32.mrf.mxu0
      %826 = vmatprep.mubr.bf16.mxu0 %v527
      %827 = vmatmul.mubr.bf16.gmra.mxu0 %v526
      %v828 = vpop.f32.mrf.mxu0
      %v829 = vadd.f32 %v595, %v828
      %v830 = vpop.f32.mrf.mxu0
      %v831 = vpop.f32.mrf.mxu0
      %v832 = vadd.f32 %v595, %v831
      %v833 = vpop.f32.mrf.mxu0
      %834 = vmatprep.mubr.bf16.mxu0 %v531
      %835 = vmatmul.mubr.bf16.gmra.mxu0 %v530
      %v836 = vpop.f32.mrf.mxu0
      %v837 = vadd.f32 %v595, %v836
      %v838 = vpop.f32.mrf.mxu0
      %v839 = vpop.f32.mrf.mxu0
      %v840 = vadd.f32 %v595, %v839
      %v841 = vpop.f32.mrf.mxu0
      %842 = vdwg.mxu0
      %843 = vmatprep.subr.bf16.mxu0 0
      %844 = vmatpush1.bf16.msra.mxu0 %v732
      %845 = vmatprep.subr.bf16.mxu0 0
      %846 = vmatpush1.bf16.msra.mxu0 %v731
      %847 = vmatprep.subr.bf16.mxu0 0
      %848 = vmatpush1.bf16.msra.mxu0 %v730
      %849 = vmatprep.subr.bf16.mxu0 0
      %850 = vmatpush1.bf16.msra.mxu0 %v729
      %851 = vmatprep.subr.bf16.mxu0 0
      %852 = vmatpush1.bf16.msra.mxu0 %v728
      %853 = vmatprep.subr.bf16.mxu0 0
      %854 = vmatpush1.bf16.msra.mxu0 %v727
      %855 = vmatprep.subr.bf16.mxu0 0
      %856 = vmatpush1.bf16.msra.mxu0 %v726
      %857 = vmatprep.subr.bf16.mxu0 0
      %858 = vmatpush1.bf16.msra.mxu0 %v725
      %859 = vmatprep.subr.bf16.mxu0 0
      %860 = vmatpush2.bf16.msra.mxu0 0
      %861 = vmatprep.subr.bf16.mxu0 0
      %862 = vmatpush2.bf16.msra.mxu0 0
      %863 = vmatprep.subr.bf16.mxu0 0
      %864 = vmatpush2.bf16.msra.mxu0 0
      %865 = vmatprep.subr.bf16.mxu0 0
      %866 = vmatpush2.bf16.msra.mxu0 0
      %867 = vmatprep.subr.bf16.mxu0 0
      %868 = vmatpush2.bf16.msra.mxu0 %v736
      %869 = vmatprep.subr.bf16.mxu0 0
      %870 = vmatpush2.bf16.msra.mxu0 %v735
      %871 = vmatprep.subr.bf16.mxu0 0
      %872 = vmatpush2.bf16.msra.mxu0 %v734
      %873 = vmatprep.subr.bf16.mxu0 0
      %874 = vmatpush2.bf16.msra.mxu0 %v733
      %875 = vmatprep.mubr.bf16.mxu0 %v767
      %876 = vmatmul.mubr.bf16.gmra.mxu0 %v520
      %v877 = vpop.f32.mrf.mxu0
      %v878 = vadd.f32 %v813, %v877
      %v879 = vpop.f32.mrf.mxu0
      %v880 = vpop.f32.mrf.mxu0
      %v881 = vadd.f32 %v816, %v880
      %v882 = vpop.f32.mrf.mxu0
      %883 = vmatprep.mubr.bf16.mxu0 %v770
      %884 = vmatmul.mubr.bf16.gmra.mxu0 %v524
      %v885 = vpop.f32.mrf.mxu0
      %v886 = vadd.f32 %v821, %v885
      %v887 = vpop.f32.mrf.mxu0
      %v888 = vpop.f32.mrf.mxu0
      %v889 = vadd.f32 %v824, %v888
      %v890 = vpop.f32.mrf.mxu0
      %891 = vmatprep.mubr.bf16.mxu0 %v773
      %892 = vmatmul.mubr.bf16.gmra.mxu0 %v528
      %v893 = vpop.f32.mrf.mxu0
      %v894 = vadd.f32 %v829, %v893
      %v895 = vpop.f32.mrf.mxu0
      %v896 = vpop.f32.mrf.mxu0
      %v897 = vadd.f32 %v832, %v896
      %v898 = vpop.f32.mrf.mxu0
      %899 = vmatprep.mubr.bf16.mxu0 %v776
      %900 = vmatmul.mubr.bf16.gmra.mxu0 %v532
      %v901 = vpop.f32.mrf.mxu0
      %v902 = vadd.f32 %v837, %v901
      %v903 = vpop.f32.mrf.mxu0
      %v904 = vpop.f32.mrf.mxu0
      %v905 = vadd.f32 %v840, %v904
      %v906 = vpop.f32.mrf.mxu0
      %907 = vdwg.mxu0
      %v908 = vlaneseq
      %v909 = vshrl.u32 %v908, 7
      %v910 = vadd.s32 %v909, 8
      %v911 = vadd.s32 %v909, 16
      %v912 = vadd.s32 %v909, 24
      %v913 = vadd.s32 %v909, 32
      %v914 = vadd.s32 %v909, 40
      %v915 = vadd.s32 %v909, 48
      %v916 = vadd.s32 %v909, 56
      %vm917 = vcmp.lt.s32.totalorder %v909, 0
      %v918 = vsub.s32 0, %v909
      %v919 = vsel %vm917, %v918, %v909
      %v920 = vshrl.u32 %v919, 3
      %v921 = vand.u32 %v919, 7
      %v922 = vsub.s32 0, %v921
      %v923 = vsel %vm917, %v922, %v921
      %vm924 = vcmp.lt.s32.totalorder %v910, 0
      %v925 = vsub.s32 0, %v910
      %v926 = vsel %vm924, %v925, %v910
      %v927 = vshrl.u32 %v926, 3
      %v928 = vand.u32 %v926, 7
      %v929 = vsub.s32 0, %v928
      %v930 = vsel %vm924, %v929, %v928
      %vm931 = vcmp.lt.s32.totalorder %v911, 0
      %v932 = vsub.s32 0, %v911
      %v933 = vsel %vm931, %v932, %v911
      %v934 = vshrl.u32 %v933, 3
      %v935 = vand.u32 %v933, 7
      %v936 = vsub.s32 0, %v935
      %v937 = vsel %vm931, %v936, %v935
      %vm938 = vcmp.lt.s32.totalorder %v912, 0
      %v939 = vsub.s32 0, %v912
      %v940 = vsel %vm938, %v939, %v912
      %v941 = vshrl.u32 %v940, 3
      %v942 = vand.u32 %v940, 7
      %v943 = vsub.s32 0, %v942
      %v944 = vsel %vm938, %v943, %v942
      %vm945 = vcmp.lt.s32.totalorder %v913, 0
      %v946 = vsub.s32 0, %v913
      %v947 = vsel %vm945, %v946, %v913
      %v948 = vshrl.u32 %v947, 3
      %v949 = vand.u32 %v947, 7
      %v950 = vsub.s32 0, %v949
      %v951 = vsel %vm945, %v950, %v949
      %vm952 = vcmp.lt.s32.totalorder %v914, 0
      %v953 = vsub.s32 0, %v914
      %v954 = vsel %vm952, %v953, %v914
      %v955 = vshrl.u32 %v954, 3
      %v956 = vand.u32 %v954, 7
      %v957 = vsub.s32 0, %v956
      %v958 = vsel %vm952, %v957, %v956
      %vm959 = vcmp.lt.s32.totalorder %v915, 0
      %v960 = vsub.s32 0, %v915
      %v961 = vsel %vm959, %v960, %v915
      %v962 = vshrl.u32 %v961, 3
      %v963 = vand.u32 %v961, 7
      %v964 = vsub.s32 0, %v963
      %v965 = vsel %vm959, %v964, %v963
      %vm966 = vcmp.lt.s32.totalorder %v916, 0
      %v967 = vsub.s32 0, %v916
      %v968 = vsel %vm966, %v967, %v916
      %v969 = vshrl.u32 %v968, 3
      %v970 = vand.u32 %v968, 7
      %v971 = vsub.s32 0, %v970
      %v972 = vsel %vm966, %v971, %v970
      %vm973 = vcmp.ne.s32.totalorder %v923, 0
      %vm974 = vcmp.ne.s32.totalorder %v930, 0
      %vm975 = vcmp.ne.s32.totalorder %v937, 0
      %vm976 = vcmp.ne.s32.totalorder %v944, 0
      %vm977 = vcmp.ne.s32.totalorder %v951, 0
      %vm978 = vcmp.ne.s32.totalorder %v958, 0
      %vm979 = vcmp.ne.s32.totalorder %v965, 0
      %vm980 = vcmp.ne.s32.totalorder %v972, 0
      %vm981 = vcmp.lt.s32.totalorder %v923, 0
      %vm982 = vcmp.lt.s32.totalorder %v930, 0
      %vm983 = vcmp.lt.s32.totalorder %v937, 0
      %vm984 = vcmp.lt.s32.totalorder %v944, 0
      %vm985 = vcmp.lt.s32.totalorder %v951, 0
      %vm986 = vcmp.lt.s32.totalorder %v958, 0
      %vm987 = vcmp.lt.s32.totalorder %v965, 0
      %vm988 = vcmp.lt.s32.totalorder %v972, 0
      %vm989 = vmand %vm981, %vm973
      %vm990 = vmand %vm982, %vm974
      %vm991 = vmand %vm983, %vm975
      %vm992 = vmand %vm984, %vm976
      %vm993 = vmand %vm985, %vm977
      %vm994 = vmand %vm986, %vm978
      %vm995 = vmand %vm987, %vm979
      %vm996 = vmand %vm988, %vm980
      %v997 = vadd.s32 %v923, 8
      %v998 = vadd.s32 %v930, 8
      %v999 = vadd.s32 %v937, 8
      %v1000 = vadd.s32 %v944, 8
      %v1001 = vadd.s32 %v951, 8
      %v1002 = vadd.s32 %v958, 8
      %v1003 = vadd.s32 %v965, 8
      %v1004 = vadd.s32 %v972, 8
      %v1005 = vsel %vm989, %v997, %v923
      %v1006 = vsel %vm990, %v998, %v930
      %v1007 = vsel %vm991, %v999, %v937
      %v1008 = vsel %vm992, %v1000, %v944
      %v1009 = vsel %vm993, %v1001, %v951
      %v1010 = vsel %vm994, %v1002, %v958
      %v1011 = vsel %vm995, %v1003, %v965
      %v1012 = vsel %vm996, %v1004, %v972
      %vm1013 = vcmp.lt.s32.totalorder %v909, 0
      %v1014 = vsub.s32 0, %v909
      %v1015 = vsel %vm1013, %v1014, %v909
      %v1016 = vshrl.u32 %v1015, 6
      %v1017 = vand.u32 %v1015, 63
      %v1018 = vsub.s32 0, %v1017
      %v1019 = vsel %vm1013, %v1018, %v1017
      %vm1020 = vcmp.lt.s32.totalorder %v910, 0
      %v1021 = vsub.s32 0, %v910
      %v1022 = vsel %vm1020, %v1021, %v910
      %v1023 = vshrl.u32 %v1022, 6
      %v1024 = vand.u32 %v1022, 63
      %v1025 = vsub.s32 0, %v1024
      %v1026 = vsel %vm1020, %v1025, %v1024
      %vm1027 = vcmp.lt.s32.totalorder %v911, 0
      %v1028 = vsub.s32 0, %v911
      %v1029 = vsel %vm1027, %v1028, %v911
      %v1030 = vshrl.u32 %v1029, 6
      %v1031 = vand.u32 %v1029, 63
      %v1032 = vsub.s32 0, %v1031
      %v1033 = vsel %vm1027, %v1032, %v1031
      %vm1034 = vcmp.lt.s32.totalorder %v912, 0
      %v1035 = vsub.s32 0, %v912
      %v1036 = vsel %vm1034, %v1035, %v912
      %v1037 = vshrl.u32 %v1036, 6
      %v1038 = vand.u32 %v1036, 63
      %v1039 = vsub.s32 0, %v1038
      %v1040 = vsel %vm1034, %v1039, %v1038
      %vm1041 = vcmp.lt.s32.totalorder %v913, 0
      %v1042 = vsub.s32 0, %v913
      %v1043 = vsel %vm1041, %v1042, %v913
      %v1044 = vshrl.u32 %v1043, 6
      %v1045 = vand.u32 %v1043, 63
      %v1046 = vsub.s32 0, %v1045
      %v1047 = vsel %vm1041, %v1046, %v1045
      %vm1048 = vcmp.lt.s32.totalorder %v914, 0
      %v1049 = vsub.s32 0, %v914
      %v1050 = vsel %vm1048, %v1049, %v914
      %v1051 = vshrl.u32 %v1050, 6
      %v1052 = vand.u32 %v1050, 63
      %v1053 = vsub.s32 0, %v1052
      %v1054 = vsel %vm1048, %v1053, %v1052
      %vm1055 = vcmp.lt.s32.totalorder %v915, 0
      %v1056 = vsub.s32 0, %v915
      %v1057 = vsel %vm1055, %v1056, %v915
      %v1058 = vshrl.u32 %v1057, 6
      %v1059 = vand.u32 %v1057, 63
      %v1060 = vsub.s32 0, %v1059
      %v1061 = vsel %vm1055, %v1060, %v1059
      %vm1062 = vcmp.lt.s32.totalorder %v916, 0
      %v1063 = vsub.s32 0, %v916
      %v1064 = vsel %vm1062, %v1063, %v916
      %v1065 = vshrl.u32 %v1064, 6
      %v1066 = vand.u32 %v1064, 63
      %v1067 = vsub.s32 0, %v1066
      %v1068 = vsel %vm1062, %v1067, %v1066
      %vm1069 = vcmp.ne.s32.totalorder %v1019, 0
      %vm1070 = vcmp.ne.s32.totalorder %v1026, 0
      %vm1071 = vcmp.ne.s32.totalorder %v1033, 0
      %vm1072 = vcmp.ne.s32.totalorder %v1040, 0
      %vm1073 = vcmp.ne.s32.totalorder %v1047, 0
      %vm1074 = vcmp.ne.s32.totalorder %v1054, 0
      %vm1075 = vcmp.ne.s32.totalorder %v1061, 0
      %vm1076 = vcmp.ne.s32.totalorder %v1068, 0
      %vm1077 = vcmp.lt.s32.totalorder %v1019, 0
      %vm1078 = vcmp.lt.s32.totalorder %v1026, 0
      %vm1079 = vcmp.lt.s32.totalorder %v1033, 0
      %vm1080 = vcmp.lt.s32.totalorder %v1040, 0
      %vm1081 = vcmp.lt.s32.totalorder %v1047, 0
      %vm1082 = vcmp.lt.s32.totalorder %v1054, 0
      %vm1083 = vcmp.lt.s32.totalorder %v1061, 0
      %vm1084 = vcmp.lt.s32.totalorder %v1068, 0
      %vm1085 = vmand %vm1077, %vm1069
      %vm1086 = vmand %vm1078, %vm1070
      %vm1087 = vmand %vm1079, %vm1071
      %vm1088 = vmand %vm1080, %vm1072
      %vm1089 = vmand %vm1081, %vm1073
      %vm1090 = vmand %vm1082, %vm1074
      %vm1091 = vmand %vm1083, %vm1075
      %vm1092 = vmand %vm1084, %vm1076
      %v1093 = vadd.s32 %v1019, 64
      %v1094 = vadd.s32 %v1026, 64
      %v1095 = vadd.s32 %v1033, 64
      %v1096 = vadd.s32 %v1040, 64
      %v1097 = vadd.s32 %v1047, 64
      %v1098 = vadd.s32 %v1054, 64
      %v1099 = vadd.s32 %v1061, 64
      %v1100 = vadd.s32 %v1068, 64
      %v1101 = vsel %vm1085, %v1093, %v1019
      %v1102 = vsel %vm1086, %v1094, %v1026
      %v1103 = vsel %vm1087, %v1095, %v1033
      %v1104 = vsel %vm1088, %v1096, %v1040
      %v1105 = vsel %vm1089, %v1097, %v1047
      %v1106 = vsel %vm1090, %v1098, %v1054
      %v1107 = vsel %vm1091, %v1099, %v1061
      %v1108 = vsel %vm1092, %v1100, %v1068
      %vm1109 = vcmp.eq.s32.totalorder %v1005, 0
      %vm1110 = vcmp.eq.s32.totalorder %v1006, 0
      %vm1111 = vcmp.eq.s32.totalorder %v1007, 0
      %vm1112 = vcmp.eq.s32.totalorder %v1008, 0
      %vm1113 = vcmp.eq.s32.totalorder %v1009, 0
      %vm1114 = vcmp.eq.s32.totalorder %v1010, 0
      %vm1115 = vcmp.eq.s32.totalorder %v1011, 0
      %vm1116 = vcmp.eq.s32.totalorder %v1012, 0
      %1125 = vrot.lane.b32.xlu0 %v878, 64
      %v1126 = vpop.permute.xlu0 %1125
      %1127 = vrot.lane.b32.xlu0 %v881, 64
      %v1128 = vpop.permute.xlu0 %1127
      %1129 = vrot.lane.b32.xlu0 %v886, 64
      %v1130 = vpop.permute.xlu0 %1129
      %1131 = vrot.lane.b32.xlu0 %v889, 64
      %v1132 = vpop.permute.xlu0 %1131
      %1133 = vrot.lane.b32.xlu0 %v894, 64
      %v1134 = vpop.permute.xlu0 %1133
      %1135 = vrot.lane.b32.xlu0 %v897, 64
      %v1136 = vpop.permute.xlu0 %1135
      %1137 = vrot.lane.b32.xlu0 %v902, 64
      %v1138 = vpop.permute.xlu0 %1137
      %1139 = vrot.lane.b32.xlu0 %v905, 64
      %v1140 = vpop.permute.xlu0 %1139
      %v1149 = vrot.slane %v1126, 7
      %v1150 = vrot.slane %v1128, 7
      %v1151 = vrot.slane %v1130, 7
      %v1152 = vrot.slane %v1132, 7
      %v1153 = vrot.slane %v1134, 7
      %v1154 = vrot.slane %v1136, 7
      %v1155 = vrot.slane %v1138, 7
      %v1156 = vrot.slane %v1140, 7
      %vm1157 = vcmp.lt.s32.totalorder %v909, 1
      %v1158 = vsel %vm1157, %v1155, %v1156
      %v1159 = vsel %vm1157, %v1154, %v1155
      %v1160 = vsel %vm1157, %v1153, %v1154
      %v1161 = vsel %vm1157, %v1152, %v1153
      %v1162 = vsel %vm1157, %v1151, %v1152
      %v1163 = vsel %vm1157, %v1150, %v1151
      %v1164 = vsel %vm1157, %v1149, %v1150
      %v1165 = vsel %vm1157, %v1156, %v1149
      %v1166 = vsel %vm1109, 1, 0
      %v1167 = vsel %vm1110, 1, 0
      %v1168 = vsel %vm1111, 1, 0
      %v1169 = vsel %vm1112, 1, 0
      %v1170 = vsel %vm1113, 1, 0
      %v1171 = vsel %vm1114, 1, 0
      %v1172 = vsel %vm1115, 1, 0
      %v1173 = vsel %vm1116, 1, 0
      %vm1174 = vcmp.eq.s32.totalorder %v1166, 1
      %vm1175 = vcmp.eq.s32.totalorder %v1167, 1
      %vm1176 = vcmp.eq.s32.totalorder %v1168, 1
      %vm1177 = vcmp.eq.s32.totalorder %v1169, 1
      %vm1178 = vcmp.eq.s32.totalorder %v1170, 1
      %vm1179 = vcmp.eq.s32.totalorder %v1171, 1
      %vm1180 = vcmp.eq.s32.totalorder %v1172, 1
      %vm1181 = vcmp.eq.s32.totalorder %v1173, 1
      %v1182 = vsel %vm1174, 0.0, %v1165
      %v1183 = vsel %vm1175, 0.0, %v1164
      %v1184 = vsel %vm1176, 0.0, %v1163
      %v1185 = vsel %vm1177, 0.0, %v1162
      %v1186 = vsel %vm1178, 0.0, %v1161
      %v1187 = vsel %vm1179, 0.0, %v1160
      %v1188 = vsel %vm1180, 0.0, %v1159
      %v1189 = vsel %vm1181, 0.0, %v1158
      %vm1190 = vcmp.eq.s32.totalorder %v1005, 7
      %vm1191 = vcmp.eq.s32.totalorder %v1006, 7
      %vm1192 = vcmp.eq.s32.totalorder %v1007, 7
      %vm1193 = vcmp.eq.s32.totalorder %v1008, 7
      %vm1194 = vcmp.eq.s32.totalorder %v1009, 7
      %vm1195 = vcmp.eq.s32.totalorder %v1010, 7
      %vm1196 = vcmp.eq.s32.totalorder %v1011, 7
      %vm1197 = vcmp.eq.s32.totalorder %v1012, 7
      %v1198 = vrot.slane %v1126, 1
      %v1199 = vrot.slane %v1128, 1
      %v1200 = vrot.slane %v1130, 1
      %v1201 = vrot.slane %v1132, 1
      %v1202 = vrot.slane %v1134, 1
      %v1203 = vrot.slane %v1136, 1
      %v1204 = vrot.slane %v1138, 1
      %v1205 = vrot.slane %v1140, 1
      %vm1206 = vcmp.lt.s32.totalorder %v909, 7
      %v1207 = vsel %vm1206, %v1204, %v1205
      %v1208 = vsel %vm1206, %v1203, %v1204
      %v1209 = vsel %vm1206, %v1202, %v1203
      %v1210 = vsel %vm1206, %v1201, %v1202
      %v1211 = vsel %vm1206, %v1200, %v1201
      %v1212 = vsel %vm1206, %v1199, %v1200
      %v1213 = vsel %vm1206, %v1198, %v1199
      %v1214 = vsel %vm1206, %v1205, %v1198
      %v1215 = vsel %vm1190, 1, 0
      %v1216 = vsel %vm1191, 1, 0
      %v1217 = vsel %vm1192, 1, 0
      %v1218 = vsel %vm1193, 1, 0
      %v1219 = vsel %vm1194, 1, 0
      %v1220 = vsel %vm1195, 1, 0
      %v1221 = vsel %vm1196, 1, 0
      %v1222 = vsel %vm1197, 1, 0
      %vm1223 = vcmp.eq.s32.totalorder %v1215, 1
      %vm1224 = vcmp.eq.s32.totalorder %v1216, 1
      %vm1225 = vcmp.eq.s32.totalorder %v1217, 1
      %vm1226 = vcmp.eq.s32.totalorder %v1218, 1
      %vm1227 = vcmp.eq.s32.totalorder %v1219, 1
      %vm1228 = vcmp.eq.s32.totalorder %v1220, 1
      %vm1229 = vcmp.eq.s32.totalorder %v1221, 1
      %vm1230 = vcmp.eq.s32.totalorder %v1222, 1
      %v1231 = vsel %vm1223, 0.0, %v1213
      %v1232 = vsel %vm1224, 0.0, %v1212
      %v1233 = vsel %vm1225, 0.0, %v1211
      %v1234 = vsel %vm1226, 0.0, %v1210
      %v1235 = vsel %vm1227, 0.0, %v1209
      %v1236 = vsel %vm1228, 0.0, %v1208
      %v1237 = vsel %vm1229, 0.0, %v1207
      %v1238 = vsel %vm1230, 0.0, %v1214
      %v1239 = vld [vmem:[%s3] sm:$0xf]
      %v1240 = vld [vmem:[%s3 + $0x4] sm:$0xf]
      %v1241 = vld [vmem:[%s3 + $0x8] sm:$0xf]
      %v1242 = vld [vmem:[%s3 + $0xc] sm:$0xf]
      %v1243 = vld [vmem:[%s3 + $0x10] sm:$0xf]
      %v1244 = vld [vmem:[%s3 + $0x14] sm:$0xf]
      %v1245 = vld [vmem:[%s3 + $0x18] sm:$0xf]
      %v1246 = vld [vmem:[%s3 + $0x1c] sm:$0xf]
      %v1247 = vpack.c.bf16 %v1183, %v1182
      %v1248 = vpack.c.bf16 %v1185, %v1184
      %v1249 = vpack.c.bf16 %v1187, %v1186
      %v1250 = vpack.c.bf16 %v1189, %v1188
      %s1251 = scalar_lea.vmem %s3, 32
      %v1252 = vld [vmem:[%s1251] sm:$0xf]
      %v1253 = vld [vmem:[%s1251 + $0x4] sm:$0xf]
      %v1254 = vld [vmem:[%s1251 + $0x8] sm:$0xf]
      %v1255 = vld [vmem:[%s1251 + $0xc] sm:$0xf]
      %v1256 = vld [vmem:[%s1251 + $0x10] sm:$0xf]
      %v1257 = vld [vmem:[%s1251 + $0x14] sm:$0xf]
      %v1258 = vld [vmem:[%s1251 + $0x18] sm:$0xf]
      %v1259 = vld [vmem:[%s1251 + $0x1c] sm:$0xf]
      %v1260 = vpack.c.bf16 %v881, %v878
      %v1261 = vpack.c.bf16 %v889, %v886
      %v1262 = vpack.c.bf16 %v897, %v894
      %v1263 = vpack.c.bf16 %v905, %v902
      %1268 = vrot.lane.b32.xlu0 %v1260, 64
      %v1269 = vpop.permute.xlu0 %1268
      %1270 = vrot.lane.b32.xlu0 %v1261, 64
      %v1271 = vpop.permute.xlu0 %1270
      %1272 = vrot.lane.b32.xlu0 %v1262, 64
      %v1273 = vpop.permute.xlu0 %1272
      %1274 = vrot.lane.b32.xlu0 %v1263, 64
      %v1275 = vpop.permute.xlu0 %1274
      %v1284 = vunpack.c.l.b16 %v1252
      %v1285 = vunpack.c.l.b16 %v1253
      %v1286 = vunpack.c.l.b16 %v1254
      %v1287 = vunpack.c.l.b16 %v1255
      %v1288 = vunpack.c.l.b16 %v1256
      %v1289 = vunpack.c.l.b16 %v1257
      %v1290 = vunpack.c.l.b16 %v1258
      %v1291 = vunpack.c.l.b16 %v1259
      %v1292 = vpack.c.b16 %v1285, %v1284
      %v1293 = vpack.c.b16 %v1287, %v1286
      %v1294 = vpack.c.b16 %v1289, %v1288
      %v1295 = vpack.c.b16 %v1291, %v1290
      %v1301 = vsel %vm765, %v1269, 0
      %v1304 = vsel %vm765, %v1271, 0
      %v1307 = vsel %vm765, %v1273, 0
      %v1310 = vsel %vm765, %v1275, 0
      %1312 = vmatprep.subr.bf16.mxu0 0
      %1313 = vmatpush1.bf16.msra.mxu0 0
      %1314 = vmatprep.subr.bf16.mxu0 0
      %1315 = vmatpush1.bf16.msra.mxu0 0
      %1316 = vmatprep.subr.bf16.mxu0 0
      %1317 = vmatpush1.bf16.msra.mxu0 0
      %1318 = vmatprep.subr.bf16.mxu0 0
      %1319 = vmatpush1.bf16.msra.mxu0 0
      %1320 = vmatprep.subr.bf16.mxu0 0
      %1321 = vmatpush1.bf16.msra.mxu0 %v1295
      %1322 = vmatprep.subr.bf16.mxu0 0
      %1323 = vmatpush1.bf16.msra.mxu0 %v1294
      %1324 = vmatprep.subr.bf16.mxu0 0
      %1325 = vmatpush1.bf16.msra.mxu0 %v1293
      %1326 = vmatprep.subr.bf16.mxu0 0
      %1327 = vmatpush1.bf16.msra.mxu0 %v1292
      %1328 = vmatprep.subr.bf16.mxu0 0
      %1329 = vmatpush2.bf16.msra.mxu0 0
      %1330 = vmatprep.subr.bf16.mxu0 0
      %1331 = vmatpush2.bf16.msra.mxu0 0
      %1332 = vmatprep.subr.bf16.mxu0 0
      %1333 = vmatpush2.bf16.msra.mxu0 0
      %1334 = vmatprep.subr.bf16.mxu0 0
      %1335 = vmatpush2.bf16.msra.mxu0 0
      %1336 = vmatprep.subr.bf16.mxu0 0
      %1337 = vmatpush2.bf16.msra.mxu0 0
      %1338 = vmatprep.subr.bf16.mxu0 0
      %1339 = vmatpush2.bf16.msra.mxu0 0
      %1340 = vmatprep.subr.bf16.mxu0 0
      %1341 = vmatpush2.bf16.msra.mxu0 0
      %1342 = vmatprep.subr.bf16.mxu0 0
      %1343 = vmatpush2.bf16.msra.mxu0 0
      %1344 = vmatprep.mubr.bf16.mxu0 0
      %1345 = vmatmul.mubr.bf16.gmra.mxu0 %v1301
      %v1346 = vpop.f32.mrf.mxu0
      %v1347 = vadd.f32 0.0, %v1346
      %v1348 = vpop.f32.mrf.mxu0
      %v1349 = vpop.f32.mrf.mxu0
      %v1350 = vadd.f32 0.0, %v1349
      %v1351 = vpop.f32.mrf.mxu0
      %1352 = vmatprep.mubr.bf16.mxu0 0
      %1353 = vmatmul.mubr.bf16.gmra.mxu0 %v1304
      %v1354 = vpop.f32.mrf.mxu0
      %v1355 = vadd.f32 0.0, %v1354
      %v1356 = vpop.f32.mrf.mxu0
      %v1357 = vpop.f32.mrf.mxu0
      %v1358 = vadd.f32 0.0, %v1357
      %v1359 = vpop.f32.mrf.mxu0
      %1360 = vmatprep.mubr.bf16.mxu0 0
      %1361 = vmatmul.mubr.bf16.gmra.mxu0 %v1307
      %v1362 = vpop.f32.mrf.mxu0
      %v1363 = vadd.f32 0.0, %v1362
      %v1364 = vpop.f32.mrf.mxu0
      %v1365 = vpop.f32.mrf.mxu0
      %v1366 = vadd.f32 0.0, %v1365
      %v1367 = vpop.f32.mrf.mxu0
      %1368 = vmatprep.mubr.bf16.mxu0 0
      %1369 = vmatmul.mubr.bf16.gmra.mxu0 %v1310
      %v1370 = vpop.f32.mrf.mxu0
      %v1371 = vadd.f32 0.0, %v1370
      %v1372 = vpop.f32.mrf.mxu0
      %v1373 = vpop.f32.mrf.mxu0
      %v1374 = vadd.f32 0.0, %v1373
      %v1375 = vpop.f32.mrf.mxu0
      %1376 = vdwg.mxu0
      %v1385 = vunpack.c.l.b16 %v1239
      %v1386 = vunpack.c.l.b16 %v1240
      %v1387 = vunpack.c.l.b16 %v1241
      %v1388 = vunpack.c.l.b16 %v1242
      %v1389 = vunpack.c.l.b16 %v1243
      %v1390 = vunpack.c.l.b16 %v1244
      %v1391 = vunpack.c.l.b16 %v1245
      %v1392 = vunpack.c.l.b16 %v1246
      %v1393 = vpack.c.b16 %v1386, %v1385
      %v1394 = vpack.c.b16 %v1388, %v1387
      %v1395 = vpack.c.b16 %v1390, %v1389
      %v1396 = vpack.c.b16 %v1392, %v1391
      %v1402 = vsel %vm765, %v1247, 0
      %v1405 = vsel %vm765, %v1248, 0
      %v1408 = vsel %vm765, %v1249, 0
      %v1411 = vsel %vm765, %v1250, 0
      %1413 = vmatprep.subr.bf16.mxu0 0
      %1414 = vmatpush1.bf16.msra.mxu0 0
      %1415 = vmatprep.subr.bf16.mxu0 0
      %1416 = vmatpush1.bf16.msra.mxu0 0
      %1417 = vmatprep.subr.bf16.mxu0 0
      %1418 = vmatpush1.bf16.msra.mxu0 0
      %1419 = vmatprep.subr.bf16.mxu0 0
      %1420 = vmatpush1.bf16.msra.mxu0 0
      %1421 = vmatprep.subr.bf16.mxu0 0
      %1422 = vmatpush1.bf16.msra.mxu0 %v1396
      %1423 = vmatprep.subr.bf16.mxu0 0
      %1424 = vmatpush1.bf16.msra.mxu0 %v1395
      %1425 = vmatprep.subr.bf16.mxu0 0
      %1426 = vmatpush1.bf16.msra.mxu0 %v1394
      %1427 = vmatprep.subr.bf16.mxu0 0
      %1428 = vmatpush1.bf16.msra.mxu0 %v1393
      %1429 = vmatprep.subr.bf16.mxu0 0
      %1430 = vmatpush2.bf16.msra.mxu0 0
      %1431 = vmatprep.subr.bf16.mxu0 0
      %1432 = vmatpush2.bf16.msra.mxu0 0
      %1433 = vmatprep.subr.bf16.mxu0 0
      %1434 = vmatpush2.bf16.msra.mxu0 0
      %1435 = vmatprep.subr.bf16.mxu0 0
      %1436 = vmatpush2.bf16.msra.mxu0 0
      %1437 = vmatprep.subr.bf16.mxu0 0
      %1438 = vmatpush2.bf16.msra.mxu0 0
      %1439 = vmatprep.subr.bf16.mxu0 0
      %1440 = vmatpush2.bf16.msra.mxu0 0
      %1441 = vmatprep.subr.bf16.mxu0 0
      %1442 = vmatpush2.bf16.msra.mxu0 0
      %1443 = vmatprep.subr.bf16.mxu0 0
      %1444 = vmatpush2.bf16.msra.mxu0 0
      %1445 = vmatprep.mubr.bf16.mxu0 0
      %1446 = vmatmul.mubr.bf16.gmra.mxu0 %v1402
      %v1447 = vpop.f32.mrf.mxu0
      %v1448 = vadd.f32 %v1347, %v1447
      %v1449 = vpop.f32.mrf.mxu0
      %v1450 = vpop.f32.mrf.mxu0
      %v1451 = vadd.f32 %v1350, %v1450
      %v1452 = vpop.f32.mrf.mxu0
      %1453 = vmatprep.mubr.bf16.mxu0 0
      %1454 = vmatmul.mubr.bf16.gmra.mxu0 %v1405
      %v1455 = vpop.f32.mrf.mxu0
      %v1456 = vadd.f32 %v1355, %v1455
      %v1457 = vpop.f32.mrf.mxu0
      %v1458 = vpop.f32.mrf.mxu0
      %v1459 = vadd.f32 %v1358, %v1458
      %v1460 = vpop.f32.mrf.mxu0
      %1461 = vmatprep.mubr.bf16.mxu0 0
      %1462 = vmatmul.mubr.bf16.gmra.mxu0 %v1408
      %v1463 = vpop.f32.mrf.mxu0
      %v1464 = vadd.f32 %v1363, %v1463
      %v1465 = vpop.f32.mrf.mxu0
      %v1466 = vpop.f32.mrf.mxu0
      %v1467 = vadd.f32 %v1366, %v1466
      %v1468 = vpop.f32.mrf.mxu0
      %1469 = vmatprep.mubr.bf16.mxu0 0
      %1470 = vmatmul.mubr.bf16.gmra.mxu0 %v1411
      %v1471 = vpop.f32.mrf.mxu0
      %v1472 = vadd.f32 %v1371, %v1471
      %v1473 = vpop.f32.mrf.mxu0
      %v1474 = vpop.f32.mrf.mxu0
      %v1475 = vadd.f32 %v1374, %v1474
      %v1476 = vpop.f32.mrf.mxu0
      %1477 = vdwg.mxu0
      %s1478 = scalar_lea.vmem %s3, 64
      %v1479 = vld [vmem:[%s1478] sm:$0xf]
      %v1480 = vld [vmem:[%s1478 + $0x4] sm:$0xf]
      %v1481 = vld [vmem:[%s1478 + $0x8] sm:$0xf]
      %v1482 = vld [vmem:[%s1478 + $0xc] sm:$0xf]
      %v1483 = vld [vmem:[%s1478 + $0x10] sm:$0xf]
      %v1484 = vld [vmem:[%s1478 + $0x14] sm:$0xf]
      %v1485 = vld [vmem:[%s1478 + $0x18] sm:$0xf]
      %v1486 = vld [vmem:[%s1478 + $0x1c] sm:$0xf]
      %v1487 = vpack.c.bf16 %v1232, %v1231
      %v1488 = vpack.c.bf16 %v1234, %v1233
      %v1489 = vpack.c.bf16 %v1236, %v1235
      %v1490 = vpack.c.bf16 %v1238, %v1237
      %v1499 = vunpack.c.l.b16 %v1479
      %v1500 = vunpack.c.l.b16 %v1480
      %v1501 = vunpack.c.l.b16 %v1481
      %v1502 = vunpack.c.l.b16 %v1482
      %v1503 = vunpack.c.l.b16 %v1483
      %v1504 = vunpack.c.l.b16 %v1484
      %v1505 = vunpack.c.l.b16 %v1485
      %v1506 = vunpack.c.l.b16 %v1486
      %v1507 = vpack.c.b16 %v1500, %v1499
      %v1508 = vpack.c.b16 %v1502, %v1501
      %v1509 = vpack.c.b16 %v1504, %v1503
      %v1510 = vpack.c.b16 %v1506, %v1505
      %v1516 = vsel %vm765, %v1487, 0
      %v1519 = vsel %vm765, %v1488, 0
      %v1522 = vsel %vm765, %v1489, 0
      %v1525 = vsel %vm765, %v1490, 0
      %1527 = vmatprep.subr.bf16.mxu0 0
      %1528 = vmatpush1.bf16.msra.mxu0 0
      %1529 = vmatprep.subr.bf16.mxu0 0
      %1530 = vmatpush1.bf16.msra.mxu0 0
      %1531 = vmatprep.subr.bf16.mxu0 0
      %1532 = vmatpush1.bf16.msra.mxu0 0
      %1533 = vmatprep.subr.bf16.mxu0 0
      %1534 = vmatpush1.bf16.msra.mxu0 0
      %1535 = vmatprep.subr.bf16.mxu0 0
      %1536 = vmatpush1.bf16.msra.mxu0 %v1510
      %1537 = vmatprep.subr.bf16.mxu0 0
      %1538 = vmatpush1.bf16.msra.mxu0 %v1509
      %1539 = vmatprep.subr.bf16.mxu0 0
      %1540 = vmatpush1.bf16.msra.mxu0 %v1508
      %1541 = vmatprep.subr.bf16.mxu0 0
      %1542 = vmatpush1.bf16.msra.mxu0 %v1507
      %1543 = vmatprep.subr.bf16.mxu0 0
      %1544 = vmatpush2.bf16.msra.mxu0 0
      %1545 = vmatprep.subr.bf16.mxu0 0
      %1546 = vmatpush2.bf16.msra.mxu0 0
      %1547 = vmatprep.subr.bf16.mxu0 0
      %1548 = vmatpush2.bf16.msra.mxu0 0
      %1549 = vmatprep.subr.bf16.mxu0 0
      %1550 = vmatpush2.bf16.msra.mxu0 0
      %1551 = vmatprep.subr.bf16.mxu0 0
      %1552 = vmatpush2.bf16.msra.mxu0 0
      %1553 = vmatprep.subr.bf16.mxu0 0
      %1554 = vmatpush2.bf16.msra.mxu0 0
      %1555 = vmatprep.subr.bf16.mxu0 0
      %1556 = vmatpush2.bf16.msra.mxu0 0
      %1557 = vmatprep.subr.bf16.mxu0 0
      %1558 = vmatpush2.bf16.msra.mxu0 0
      %1559 = vmatprep.mubr.bf16.mxu0 0
      %1560 = vmatmul.mubr.bf16.gmra.mxu0 %v1516
      %v1561 = vpop.f32.mrf.mxu0
      %v1562 = vadd.f32 0.0, %v1561
      %v1563 = vpop.f32.mrf.mxu0
      %v1564 = vpop.f32.mrf.mxu0
      %v1565 = vadd.f32 0.0, %v1564
      %v1566 = vpop.f32.mrf.mxu0
      %1567 = vmatprep.mubr.bf16.mxu0 0
      %1568 = vmatmul.mubr.bf16.gmra.mxu0 %v1519
      %v1569 = vpop.f32.mrf.mxu0
      %v1570 = vadd.f32 0.0, %v1569
      %v1571 = vpop.f32.mrf.mxu0
      %v1572 = vpop.f32.mrf.mxu0
      %v1573 = vadd.f32 0.0, %v1572
      %v1574 = vpop.f32.mrf.mxu0
      %1575 = vmatprep.mubr.bf16.mxu0 0
      %1576 = vmatmul.mubr.bf16.gmra.mxu0 %v1522
      %v1577 = vpop.f32.mrf.mxu0
      %v1578 = vadd.f32 0.0, %v1577
      %v1579 = vpop.f32.mrf.mxu0
      %v1580 = vpop.f32.mrf.mxu0
      %v1581 = vadd.f32 0.0, %v1580
      %v1582 = vpop.f32.mrf.mxu0
      %1583 = vmatprep.mubr.bf16.mxu0 0
      %1584 = vmatmul.mubr.bf16.gmra.mxu0 %v1525
      %v1585 = vpop.f32.mrf.mxu0
      %v1586 = vadd.f32 0.0, %v1585
      %v1587 = vpop.f32.mrf.mxu0
      %v1588 = vpop.f32.mrf.mxu0
      %v1589 = vadd.f32 0.0, %v1588
      %v1590 = vpop.f32.mrf.mxu0
      %1591 = vdwg.mxu0
      %v1592 = vadd.f32 %v1448, %v1562
      %v1593 = vadd.f32 %v1451, %v1565
      %v1594 = vadd.f32 %v1456, %v1570
      %v1595 = vadd.f32 %v1459, %v1573
      %v1596 = vadd.f32 %v1464, %v1578
      %v1597 = vadd.f32 %v1467, %v1581
      %v1598 = vadd.f32 %v1472, %v1586
      %v1599 = vadd.f32 %v1475, %v1589
      %v1600 = vld [vmem:[%s4] sm:$0x1]
      %v1602 = vlaneseq
      %v1603 = vshrl.u32 %v1602, 7
      %v1604 = vsub.s32 0, %v1603
      %v1605 = vrot.slane %v1600, %v1604
      %v1607 = vadd.f32 %v1592, %v1605
      %v1608 = vadd.f32 %v1593, %v1605
      %v1609 = vadd.f32 %v1594, %v1605
      %v1610 = vadd.f32 %v1595, %v1605
      %v1611 = vadd.f32 %v1596, %v1605
      %v1612 = vadd.f32 %v1597, %v1605
      %v1613 = vadd.f32 %v1598, %v1605
      %v1614 = vadd.f32 %v1599, %v1605
      %vm1615 = vcmp.lt.s32.totalorder %v1101, 8
      %vm1616 = vcmp.lt.s32.totalorder %v1102, 8
      %vm1617 = vcmp.lt.s32.totalorder %v1103, 8
      %vm1618 = vcmp.lt.s32.totalorder %v1104, 8
      %vm1619 = vcmp.lt.s32.totalorder %v1105, 8
      %vm1620 = vcmp.lt.s32.totalorder %v1106, 8
      %vm1621 = vcmp.lt.s32.totalorder %v1107, 8
      %vm1622 = vcmp.lt.s32.totalorder %v1108, 8
      %v1623 = vsel %vm1615, 1, 0
      %v1624 = vsel %vm1616, 1, 0
      %v1625 = vsel %vm1617, 1, 0
      %v1626 = vsel %vm1618, 1, 0
      %v1627 = vsel %vm1619, 1, 0
      %v1628 = vsel %vm1620, 1, 0
      %v1629 = vsel %vm1621, 1, 0
      %v1630 = vsel %vm1622, 1, 0
      %vm1631 = vcmp.eq.s32.totalorder %v1623, 1
      %vm1632 = vcmp.eq.s32.totalorder %v1624, 1
      %vm1633 = vcmp.eq.s32.totalorder %v1625, 1
      %vm1634 = vcmp.eq.s32.totalorder %v1626, 1
      %vm1635 = vcmp.eq.s32.totalorder %v1627, 1
      %vm1636 = vcmp.eq.s32.totalorder %v1628, 1
      %vm1637 = vcmp.eq.s32.totalorder %v1629, 1
      %vm1638 = vcmp.eq.s32.totalorder %v1630, 1
      %v1639 = vsel %vm1631, 0.0, %v1614
      %v1640 = vsel %vm1632, 0.0, %v1607
      %v1641 = vsel %vm1633, 0.0, %v1608
      %v1642 = vsel %vm1634, 0.0, %v1609
      %v1643 = vsel %vm1635, 0.0, %v1610
      %v1644 = vsel %vm1636, 0.0, %v1611
      %v1645 = vsel %vm1637, 0.0, %v1612
      %v1646 = vsel %vm1638, 0.0, %v1613
      %vm1647 = vcmp.ge.s32.totalorder %v1101, 56
      %vm1648 = vcmp.ge.s32.totalorder %v1102, 56
      %vm1649 = vcmp.ge.s32.totalorder %v1103, 56
      %vm1650 = vcmp.ge.s32.totalorder %v1104, 56
      %vm1651 = vcmp.ge.s32.totalorder %v1105, 56
      %vm1652 = vcmp.ge.s32.totalorder %v1106, 56
      %vm1653 = vcmp.ge.s32.totalorder %v1107, 56
      %vm1654 = vcmp.ge.s32.totalorder %v1108, 56
      %v1655 = vsel %vm1647, 1, 0
      %v1656 = vsel %vm1648, 1, 0
      %v1657 = vsel %vm1649, 1, 0
      %v1658 = vsel %vm1650, 1, 0
      %v1659 = vsel %vm1651, 1, 0
      %v1660 = vsel %vm1652, 1, 0
      %v1661 = vsel %vm1653, 1, 0
      %v1662 = vsel %vm1654, 1, 0
      %vm1663 = vcmp.eq.s32.totalorder %v1655, 1
      %vm1664 = vcmp.eq.s32.totalorder %v1656, 1
      %vm1665 = vcmp.eq.s32.totalorder %v1657, 1
      %vm1666 = vcmp.eq.s32.totalorder %v1658, 1
      %vm1667 = vcmp.eq.s32.totalorder %v1659, 1
      %vm1668 = vcmp.eq.s32.totalorder %v1660, 1
      %vm1669 = vcmp.eq.s32.totalorder %v1661, 1
      %vm1670 = vcmp.eq.s32.totalorder %v1662, 1
      %v1671 = vsel %vm1663, 0.0, %v1608
      %v1672 = vsel %vm1664, 0.0, %v1609
      %v1673 = vsel %vm1665, 0.0, %v1610
      %v1674 = vsel %vm1666, 0.0, %v1611
      %v1675 = vsel %vm1667, 0.0, %v1612
      %v1676 = vsel %vm1668, 0.0, %v1613
      %v1677 = vsel %vm1669, 0.0, %v1614
      %v1678 = vsel %vm1670, 0.0, %v1607
      %v1679 = vld [vmem:[%s5] sm:$0xf]
      %v1680 = vld [vmem:[%s5 + $0x4] sm:$0xf]
      %v1681 = vld [vmem:[%s5 + $0x8] sm:$0xf]
      %v1682 = vld [vmem:[%s5 + $0xc] sm:$0xf]
      %v1683 = vld [vmem:[%s5 + $0x10] sm:$0xf]
      %v1684 = vld [vmem:[%s5 + $0x14] sm:$0xf]
      %v1685 = vld [vmem:[%s5 + $0x18] sm:$0xf]
      %v1686 = vld [vmem:[%s5 + $0x1c] sm:$0xf]
      %v1687 = vpack.c.bf16 %v1640, %v1639
      %v1688 = vpack.c.bf16 %v1642, %v1641
      %v1689 = vpack.c.bf16 %v1644, %v1643
      %v1690 = vpack.c.bf16 %v1646, %v1645
      %s1691 = scalar_lea.vmem %s5, 32
      %v1692 = vld [vmem:[%s1691] sm:$0xf]
      %v1693 = vld [vmem:[%s1691 + $0x4] sm:$0xf]
      %v1694 = vld [vmem:[%s1691 + $0x8] sm:$0xf]
      %v1695 = vld [vmem:[%s1691 + $0xc] sm:$0xf]
      %v1696 = vld [vmem:[%s1691 + $0x10] sm:$0xf]
      %v1697 = vld [vmem:[%s1691 + $0x14] sm:$0xf]
      %v1698 = vld [vmem:[%s1691 + $0x18] sm:$0xf]
      %v1699 = vld [vmem:[%s1691 + $0x1c] sm:$0xf]
      %v1700 = vpack.c.bf16 %v1608, %v1607
      %v1701 = vpack.c.bf16 %v1610, %v1609
      %v1702 = vpack.c.bf16 %v1612, %v1611
      %v1703 = vpack.c.bf16 %v1614, %v1613
      %v1712 = vunpack.c.l.b16 %v1692
      %v1713 = vunpack.c.l.b16 %v1693
      %v1714 = vunpack.c.l.b16 %v1694
      %v1715 = vunpack.c.l.b16 %v1695
      %v1716 = vunpack.c.l.b16 %v1696
      %v1717 = vunpack.c.l.b16 %v1697
      %v1718 = vunpack.c.l.b16 %v1698
      %v1719 = vunpack.c.l.b16 %v1699
      %v1720 = vpack.c.b16 %v1713, %v1712
      %v1721 = vpack.c.b16 %v1715, %v1714
      %v1722 = vpack.c.b16 %v1717, %v1716
      %v1723 = vpack.c.b16 %v1719, %v1718
      %v1729 = vsel %vm765, %v1700, 0
      %v1732 = vsel %vm765, %v1701, 0
      %v1735 = vsel %vm765, %v1702, 0
      %v1738 = vsel %vm765, %v1703, 0
      %1740 = vmatprep.subr.bf16.mxu0 0
      %1741 = vmatpush1.bf16.msra.mxu0 0
      %1742 = vmatprep.subr.bf16.mxu0 0
      %1743 = vmatpush1.bf16.msra.mxu0 0
      %1744 = vmatprep.subr.bf16.mxu0 0
      %1745 = vmatpush1.bf16.msra.mxu0 0
      %1746 = vmatprep.subr.bf16.mxu0 0
      %1747 = vmatpush1.bf16.msra.mxu0 0
      %1748 = vmatprep.subr.bf16.mxu0 0
      %1749 = vmatpush1.bf16.msra.mxu0 %v1723
      %1750 = vmatprep.subr.bf16.mxu0 0
      %1751 = vmatpush1.bf16.msra.mxu0 %v1722
      %1752 = vmatprep.subr.bf16.mxu0 0
      %1753 = vmatpush1.bf16.msra.mxu0 %v1721
      %1754 = vmatprep.subr.bf16.mxu0 0
      %1755 = vmatpush1.bf16.msra.mxu0 %v1720
      %1756 = vmatprep.subr.bf16.mxu0 0
      %1757 = vmatpush2.bf16.msra.mxu0 0
      %1758 = vmatprep.subr.bf16.mxu0 0
      %1759 = vmatpush2.bf16.msra.mxu0 0
      %1760 = vmatprep.subr.bf16.mxu0 0
      %1761 = vmatpush2.bf16.msra.mxu0 0
      %1762 = vmatprep.subr.bf16.mxu0 0
      %1763 = vmatpush2.bf16.msra.mxu0 0
      %1764 = vmatprep.subr.bf16.mxu0 0
      %1765 = vmatpush2.bf16.msra.mxu0 0
      %1766 = vmatprep.subr.bf16.mxu0 0
      %1767 = vmatpush2.bf16.msra.mxu0 0
      %1768 = vmatprep.subr.bf16.mxu0 0
      %1769 = vmatpush2.bf16.msra.mxu0 0
      %1770 = vmatprep.subr.bf16.mxu0 0
      %1771 = vmatpush2.bf16.msra.mxu0 0
      %1772 = vmatprep.mubr.bf16.mxu0 0
      %1773 = vmatmul.mubr.bf16.gmra.mxu0 %v1729
      %v1774 = vpop.f32.mrf.mxu0
      %v1775 = vadd.f32 0.0, %v1774
      %v1776 = vpop.f32.mrf.mxu0
      %v1777 = vpop.f32.mrf.mxu0
      %v1778 = vadd.f32 0.0, %v1777
      %v1779 = vpop.f32.mrf.mxu0
      %1780 = vmatprep.mubr.bf16.mxu0 0
      %1781 = vmatmul.mubr.bf16.gmra.mxu0 %v1732
      %v1782 = vpop.f32.mrf.mxu0
      %v1783 = vadd.f32 0.0, %v1782
      %v1784 = vpop.f32.mrf.mxu0
      %v1785 = vpop.f32.mrf.mxu0
      %v1786 = vadd.f32 0.0, %v1785
      %v1787 = vpop.f32.mrf.mxu0
      %1788 = vmatprep.mubr.bf16.mxu0 0
      %1789 = vmatmul.mubr.bf16.gmra.mxu0 %v1735
      %v1790 = vpop.f32.mrf.mxu0
      %v1791 = vadd.f32 0.0, %v1790
      %v1792 = vpop.f32.mrf.mxu0
      %v1793 = vpop.f32.mrf.mxu0
      %v1794 = vadd.f32 0.0, %v1793
      %v1795 = vpop.f32.mrf.mxu0
      %1796 = vmatprep.mubr.bf16.mxu0 0
      %1797 = vmatmul.mubr.bf16.gmra.mxu0 %v1738
      %v1798 = vpop.f32.mrf.mxu0
      %v1799 = vadd.f32 0.0, %v1798
      %v1800 = vpop.f32.mrf.mxu0
      %v1801 = vpop.f32.mrf.mxu0
      %v1802 = vadd.f32 0.0, %v1801
      %v1803 = vpop.f32.mrf.mxu0
      %1804 = vdwg.mxu0
      %v1813 = vunpack.c.l.b16 %v1679
      %v1814 = vunpack.c.l.b16 %v1680
      %v1815 = vunpack.c.l.b16 %v1681
      %v1816 = vunpack.c.l.b16 %v1682
      %v1817 = vunpack.c.l.b16 %v1683
      %v1818 = vunpack.c.l.b16 %v1684
      %v1819 = vunpack.c.l.b16 %v1685
      %v1820 = vunpack.c.l.b16 %v1686
      %v1821 = vpack.c.b16 %v1814, %v1813
      %v1822 = vpack.c.b16 %v1816, %v1815
      %v1823 = vpack.c.b16 %v1818, %v1817
      %v1824 = vpack.c.b16 %v1820, %v1819
      %v1830 = vsel %vm765, %v1687, 0
      %v1833 = vsel %vm765, %v1688, 0
      %v1836 = vsel %vm765, %v1689, 0
      %v1839 = vsel %vm765, %v1690, 0
      %1841 = vmatprep.subr.bf16.mxu0 0
      %1842 = vmatpush1.bf16.msra.mxu0 0
      %1843 = vmatprep.subr.bf16.mxu0 0
      %1844 = vmatpush1.bf16.msra.mxu0 0
      %1845 = vmatprep.subr.bf16.mxu0 0
      %1846 = vmatpush1.bf16.msra.mxu0 0
      %1847 = vmatprep.subr.bf16.mxu0 0
      %1848 = vmatpush1.bf16.msra.mxu0 0
      %1849 = vmatprep.subr.bf16.mxu0 0
      %1850 = vmatpush1.bf16.msra.mxu0 %v1824
      %1851 = vmatprep.subr.bf16.mxu0 0
      %1852 = vmatpush1.bf16.msra.mxu0 %v1823
      %1853 = vmatprep.subr.bf16.mxu0 0
      %1854 = vmatpush1.bf16.msra.mxu0 %v1822
      %1855 = vmatprep.subr.bf16.mxu0 0
      %1856 = vmatpush1.bf16.msra.mxu0 %v1821
      %1857 = vmatprep.subr.bf16.mxu0 0
      %1858 = vmatpush2.bf16.msra.mxu0 0
      %1859 = vmatprep.subr.bf16.mxu0 0
      %1860 = vmatpush2.bf16.msra.mxu0 0
      %1861 = vmatprep.subr.bf16.mxu0 0
      %1862 = vmatpush2.bf16.msra.mxu0 0
      %1863 = vmatprep.subr.bf16.mxu0 0
      %1864 = vmatpush2.bf16.msra.mxu0 0
      %1865 = vmatprep.subr.bf16.mxu0 0
      %1866 = vmatpush2.bf16.msra.mxu0 0
      %1867 = vmatprep.subr.bf16.mxu0 0
      %1868 = vmatpush2.bf16.msra.mxu0 0
      %1869 = vmatprep.subr.bf16.mxu0 0
      %1870 = vmatpush2.bf16.msra.mxu0 0
      %1871 = vmatprep.subr.bf16.mxu0 0
      %1872 = vmatpush2.bf16.msra.mxu0 0
      %1873 = vmatprep.mubr.bf16.mxu0 0
      %1874 = vmatmul.mubr.bf16.gmra.mxu0 %v1830
      %v1875 = vpop.f32.mrf.mxu0
      %v1876 = vadd.f32 %v1775, %v1875
      %v1877 = vpop.f32.mrf.mxu0
      %v1878 = vpop.f32.mrf.mxu0
      %v1879 = vadd.f32 %v1778, %v1878
      %v1880 = vpop.f32.mrf.mxu0
      %1881 = vmatprep.mubr.bf16.mxu0 0
      %1882 = vmatmul.mubr.bf16.gmra.mxu0 %v1833
      %v1883 = vpop.f32.mrf.mxu0
      %v1884 = vadd.f32 %v1783, %v1883
      %v1885 = vpop.f32.mrf.mxu0
      %v1886 = vpop.f32.mrf.mxu0
      %v1887 = vadd.f32 %v1786, %v1886
      %v1888 = vpop.f32.mrf.mxu0
      %1889 = vmatprep.mubr.bf16.mxu0 0
      %1890 = vmatmul.mubr.bf16.gmra.mxu0 %v1836
      %v1891 = vpop.f32.mrf.mxu0
      %v1892 = vadd.f32 %v1791, %v1891
      %v1893 = vpop.f32.mrf.mxu0
      %v1894 = vpop.f32.mrf.mxu0
      %v1895 = vadd.f32 %v1794, %v1894
      %v1896 = vpop.f32.mrf.mxu0
      %1897 = vmatprep.mubr.bf16.mxu0 0
      %1898 = vmatmul.mubr.bf16.gmra.mxu0 %v1839
      %v1899 = vpop.f32.mrf.mxu0
      %v1900 = vadd.f32 %v1799, %v1899
      %v1901 = vpop.f32.mrf.mxu0
      %v1902 = vpop.f32.mrf.mxu0
      %v1903 = vadd.f32 %v1802, %v1902
      %v1904 = vpop.f32.mrf.mxu0
      %1905 = vdwg.mxu0
      %s1906 = scalar_lea.vmem %s5, 64
      %v1907 = vld [vmem:[%s1906] sm:$0xf]
      %v1908 = vld [vmem:[%s1906 + $0x4] sm:$0xf]
      %v1909 = vld [vmem:[%s1906 + $0x8] sm:$0xf]
      %v1910 = vld [vmem:[%s1906 + $0xc] sm:$0xf]
      %v1911 = vld [vmem:[%s1906 + $0x10] sm:$0xf]
      %v1912 = vld [vmem:[%s1906 + $0x14] sm:$0xf]
      %v1913 = vld [vmem:[%s1906 + $0x18] sm:$0xf]
      %v1914 = vld [vmem:[%s1906 + $0x1c] sm:$0xf]
      %v1915 = vpack.c.bf16 %v1672, %v1671
      %v1916 = vpack.c.bf16 %v1674, %v1673
      %v1917 = vpack.c.bf16 %v1676, %v1675
      %v1918 = vpack.c.bf16 %v1678, %v1677
      %v1927 = vunpack.c.l.b16 %v1907
      %v1928 = vunpack.c.l.b16 %v1908
      %v1929 = vunpack.c.l.b16 %v1909
      %v1930 = vunpack.c.l.b16 %v1910
      %v1931 = vunpack.c.l.b16 %v1911
      %v1932 = vunpack.c.l.b16 %v1912
      %v1933 = vunpack.c.l.b16 %v1913
      %v1934 = vunpack.c.l.b16 %v1914
      %v1935 = vpack.c.b16 %v1928, %v1927
      %v1936 = vpack.c.b16 %v1930, %v1929
      %v1937 = vpack.c.b16 %v1932, %v1931
      %v1938 = vpack.c.b16 %v1934, %v1933
      %v1944 = vsel %vm765, %v1915, 0
      %v1947 = vsel %vm765, %v1916, 0
      %v1950 = vsel %vm765, %v1917, 0
      %v1953 = vsel %vm765, %v1918, 0
      %1955 = vmatprep.subr.bf16.mxu0 0
      %1956 = vmatpush1.bf16.msra.mxu0 0
      %1957 = vmatprep.subr.bf16.mxu0 0
      %1958 = vmatpush1.bf16.msra.mxu0 0
      %1959 = vmatprep.subr.bf16.mxu0 0
      %1960 = vmatpush1.bf16.msra.mxu0 0
      %1961 = vmatprep.subr.bf16.mxu0 0
      %1962 = vmatpush1.bf16.msra.mxu0 0
      %1963 = vmatprep.subr.bf16.mxu0 0
      %1964 = vmatpush1.bf16.msra.mxu0 %v1938
      %1965 = vmatprep.subr.bf16.mxu0 0
      %1966 = vmatpush1.bf16.msra.mxu0 %v1937
      %1967 = vmatprep.subr.bf16.mxu0 0
      %1968 = vmatpush1.bf16.msra.mxu0 %v1936
      %1969 = vmatprep.subr.bf16.mxu0 0
      %1970 = vmatpush1.bf16.msra.mxu0 %v1935
      %1971 = vmatprep.subr.bf16.mxu0 0
      %1972 = vmatpush2.bf16.msra.mxu0 0
      %1973 = vmatprep.subr.bf16.mxu0 0
      %1974 = vmatpush2.bf16.msra.mxu0 0
      %1975 = vmatprep.subr.bf16.mxu0 0
      %1976 = vmatpush2.bf16.msra.mxu0 0
      %1977 = vmatprep.subr.bf16.mxu0 0
      %1978 = vmatpush2.bf16.msra.mxu0 0
      %1979 = vmatprep.subr.bf16.mxu0 0
      %1980 = vmatpush2.bf16.msra.mxu0 0
      %1981 = vmatprep.subr.bf16.mxu0 0
      %1982 = vmatpush2.bf16.msra.mxu0 0
      %1983 = vmatprep.subr.bf16.mxu0 0
      %1984 = vmatpush2.bf16.msra.mxu0 0
      %1985 = vmatprep.subr.bf16.mxu0 0
      %1986 = vmatpush2.bf16.msra.mxu0 0
      %1987 = vmatprep.mubr.bf16.mxu0 0
      %1988 = vmatmul.mubr.bf16.gmra.mxu0 %v1944
      %v1989 = vpop.f32.mrf.mxu0
      %v1990 = vadd.f32 0.0, %v1989
      %v1991 = vpop.f32.mrf.mxu0
      %v1992 = vpop.f32.mrf.mxu0
      %v1993 = vadd.f32 0.0, %v1992
      %v1994 = vpop.f32.mrf.mxu0
      %1995 = vmatprep.mubr.bf16.mxu0 0
      %1996 = vmatmul.mubr.bf16.gmra.mxu0 %v1947
      %v1997 = vpop.f32.mrf.mxu0
      %v1998 = vadd.f32 0.0, %v1997
      %v1999 = vpop.f32.mrf.mxu0
      %v2000 = vpop.f32.mrf.mxu0
      %v2001 = vadd.f32 0.0, %v2000
      %v2002 = vpop.f32.mrf.mxu0
      %2003 = vmatprep.mubr.bf16.mxu0 0
      %2004 = vmatmul.mubr.bf16.gmra.mxu0 %v1950
      %v2005 = vpop.f32.mrf.mxu0
      %v2006 = vadd.f32 0.0, %v2005
      %v2007 = vpop.f32.mrf.mxu0
      %v2008 = vpop.f32.mrf.mxu0
      %v2009 = vadd.f32 0.0, %v2008
      %v2010 = vpop.f32.mrf.mxu0
      %2011 = vmatprep.mubr.bf16.mxu0 0
      %2012 = vmatmul.mubr.bf16.gmra.mxu0 %v1953
      %v2013 = vpop.f32.mrf.mxu0
      %v2014 = vadd.f32 0.0, %v2013
      %v2015 = vpop.f32.mrf.mxu0
      %v2016 = vpop.f32.mrf.mxu0
      %v2017 = vadd.f32 0.0, %v2016
      %v2018 = vpop.f32.mrf.mxu0
      %2019 = vdwg.mxu0
      %v2020 = vadd.f32 %v1876, %v1990
      %v2021 = vadd.f32 %v1879, %v1993
      %v2022 = vadd.f32 %v1884, %v1998
      %v2023 = vadd.f32 %v1887, %v2001
      %v2024 = vadd.f32 %v1892, %v2006
      %v2025 = vadd.f32 %v1895, %v2009
      %v2026 = vadd.f32 %v1900, %v2014
      %v2027 = vadd.f32 %v1903, %v2017
      %v2028 = vld [vmem:[%s6] sm:$0x1]
      %v2030 = vlaneseq
      %v2031 = vshrl.u32 %v2030, 7
      %v2032 = vsub.s32 0, %v2031
      %v2033 = vrot.slane %v2028, %v2032
      %v2035 = vadd.f32 %v2020, %v2033
      %v2036 = vadd.f32 %v2021, %v2033
      %v2037 = vadd.f32 %v2022, %v2033
      %v2038 = vadd.f32 %v2023, %v2033
      %v2039 = vadd.f32 %v2024, %v2033
      %v2040 = vadd.f32 %v2025, %v2033
      %v2041 = vadd.f32 %v2026, %v2033
      %v2042 = vadd.f32 %v2027, %v2033
      %v2043 = vld [vmem:[%s7] sm:$0xff]
      %v2044 = vld [vmem:[%s7 + $0x8] sm:$0xff]
      %v2045 = vld [vmem:[%s7 + $0x10] sm:$0xff]
      %v2046 = vld [vmem:[%s7 + $0x18] sm:$0xff]
      %v2047 = vld [vmem:[%s7 + $0x20] sm:$0xff]
      %v2048 = vld [vmem:[%s7 + $0x28] sm:$0xff]
      %v2049 = vld [vmem:[%s7 + $0x30] sm:$0xff]
      %v2050 = vld [vmem:[%s7 + $0x38] sm:$0xff]
      %v2051 = vld [vmem:[%s7 + $0x40] sm:$0xff]
      %v2052 = vld [vmem:[%s7 + $0x48] sm:$0xff]
      %v2053 = vld [vmem:[%s7 + $0x50] sm:$0xff]
      %v2054 = vld [vmem:[%s7 + $0x58] sm:$0xff]
      %v2055 = vld [vmem:[%s7 + $0x60] sm:$0xff]
      %v2056 = vld [vmem:[%s7 + $0x68] sm:$0xff]
      %v2057 = vld [vmem:[%s7 + $0x70] sm:$0xff]
      %v2058 = vld [vmem:[%s7 + $0x78] sm:$0xff]
      %s2059 = scalar_lea.vmem %s7, 128
      %v2060 = vld [vmem:[%s2059] sm:$0xff]
      %v2061 = vld [vmem:[%s2059 + $0x8] sm:$0xff]
      %v2062 = vld [vmem:[%s2059 + $0x10] sm:$0xff]
      %v2063 = vld [vmem:[%s2059 + $0x18] sm:$0xff]
      %v2064 = vld [vmem:[%s2059 + $0x20] sm:$0xff]
      %v2065 = vld [vmem:[%s2059 + $0x28] sm:$0xff]
      %v2066 = vld [vmem:[%s2059 + $0x30] sm:$0xff]
      %v2067 = vld [vmem:[%s2059 + $0x38] sm:$0xff]
      %v2068 = vld [vmem:[%s2059 + $0x40] sm:$0xff]
      %v2069 = vld [vmem:[%s2059 + $0x48] sm:$0xff]
      %v2070 = vld [vmem:[%s2059 + $0x50] sm:$0xff]
      %v2071 = vld [vmem:[%s2059 + $0x58] sm:$0xff]
      %v2072 = vld [vmem:[%s2059 + $0x60] sm:$0xff]
      %v2073 = vld [vmem:[%s2059 + $0x68] sm:$0xff]
      %v2074 = vld [vmem:[%s2059 + $0x70] sm:$0xff]
      %v2075 = vld [vmem:[%s2059 + $0x78] sm:$0xff]
      %v2076 = vpack.c.bf16 %v2036, %v2035
      %v2077 = vpack.c.bf16 %v2038, %v2037
      %v2078 = vpack.c.bf16 %v2040, %v2039
      %v2079 = vpack.c.bf16 %v2042, %v2041
      %v2096 = vunpack.c.l.b16 %v2060
      %v2097 = vunpack.c.h.b16 %v2060
      %v2098 = vunpack.c.l.b16 %v2061
      %v2099 = vunpack.c.h.b16 %v2061
      %v2100 = vunpack.c.l.b16 %v2062
      %v2101 = vunpack.c.h.b16 %v2062
      %v2102 = vunpack.c.l.b16 %v2063
      %v2103 = vunpack.c.h.b16 %v2063
      %v2104 = vunpack.c.l.b16 %v2064
      %v2105 = vunpack.c.h.b16 %v2064
      %v2106 = vunpack.c.l.b16 %v2065
      %v2107 = vunpack.c.h.b16 %v2065
      %v2108 = vunpack.c.l.b16 %v2066
      %v2109 = vunpack.c.h.b16 %v2066
      %v2110 = vunpack.c.l.b16 %v2067
      %v2111 = vunpack.c.h.b16 %v2067
      %v2112 = vunpack.c.l.b16 %v2068
      %v2113 = vunpack.c.h.b16 %v2068
      %v2114 = vunpack.c.l.b16 %v2069
      %v2115 = vunpack.c.h.b16 %v2069
      %v2116 = vunpack.c.l.b16 %v2070
      %v2117 = vunpack.c.h.b16 %v2070
      %v2118 = vunpack.c.l.b16 %v2071
      %v2119 = vunpack.c.h.b16 %v2071
      %v2120 = vunpack.c.l.b16 %v2072
      %v2121 = vunpack.c.h.b16 %v2072
      %v2122 = vunpack.c.l.b16 %v2073
      %v2123 = vunpack.c.h.b16 %v2073
      %v2124 = vunpack.c.l.b16 %v2074
      %v2125 = vunpack.c.h.b16 %v2074
      %v2126 = vunpack.c.l.b16 %v2075
      %v2127 = vunpack.c.h.b16 %v2075
      %v2128 = vpack.c.b16 %v2100, %v2096
      %v2129 = vpack.c.b16 %v2101, %v2097
      %v2130 = vpack.c.b16 %v2102, %v2098
      %v2131 = vpack.c.b16 %v2103, %v2099
      %v2132 = vpack.c.b16 %v2108, %v2104
      %v2133 = vpack.c.b16 %v2109, %v2105
      %v2134 = vpack.c.b16 %v2110, %v2106
      %v2135 = vpack.c.b16 %v2111, %v2107
      %v2136 = vpack.c.b16 %v2116, %v2112
      %v2137 = vpack.c.b16 %v2117, %v2113
      %v2138 = vpack.c.b16 %v2118, %v2114
      %v2139 = vpack.c.b16 %v2119, %v2115
      %v2140 = vpack.c.b16 %v2124, %v2120
      %v2141 = vpack.c.b16 %v2125, %v2121
      %v2142 = vpack.c.b16 %v2126, %v2122
      %v2143 = vpack.c.b16 %v2127, %v2123
      %v2161 = vsel %vm765, %v2076, 0
      %v2164 = vsel %vm765, %v2077, 0
      %v2167 = vsel %vm765, %v2078, 0
      %v2170 = vsel %vm765, %v2079, 0
      %2172 = vmatprep.subr.bf16.mxu0 0
      %2173 = vmatpush1.bf16.msra.mxu0 0
      %2174 = vmatprep.subr.bf16.mxu0 0
      %2175 = vmatpush1.bf16.msra.mxu0 0
      %2176 = vmatprep.subr.bf16.mxu0 0
      %2177 = vmatpush1.bf16.msra.mxu0 0
      %2178 = vmatprep.subr.bf16.mxu0 0
      %2179 = vmatpush1.bf16.msra.mxu0 0
      %2180 = vmatprep.subr.bf16.mxu0 %v2141
      %2181 = vmatpush1.bf16.msra.mxu0 %v2140
      %2182 = vmatprep.subr.bf16.mxu0 %v2137
      %2183 = vmatpush1.bf16.msra.mxu0 %v2136
      %2184 = vmatprep.subr.bf16.mxu0 %v2133
      %2185 = vmatpush1.bf16.msra.mxu0 %v2132
      %2186 = vmatprep.subr.bf16.mxu0 %v2129
      %2187 = vmatpush1.bf16.msra.mxu0 %v2128
      %2188 = vmatprep.subr.bf16.mxu0 0
      %2189 = vmatpush2.bf16.msra.mxu0 0
      %2190 = vmatprep.subr.bf16.mxu0 0
      %2191 = vmatpush2.bf16.msra.mxu0 0
      %2192 = vmatprep.subr.bf16.mxu0 0
      %2193 = vmatpush2.bf16.msra.mxu0 0
      %2194 = vmatprep.subr.bf16.mxu0 0
      %2195 = vmatpush2.bf16.msra.mxu0 0
      %2196 = vmatprep.subr.bf16.mxu0 0
      %2197 = vmatpush2.bf16.msra.mxu0 0
      %2198 = vmatprep.subr.bf16.mxu0 0
      %2199 = vmatpush2.bf16.msra.mxu0 0
      %2200 = vmatprep.subr.bf16.mxu0 0
      %2201 = vmatpush2.bf16.msra.mxu0 0
      %2202 = vmatprep.subr.bf16.mxu0 0
      %2203 = vmatpush2.bf16.msra.mxu0 0
      %2204 = vmatprep.mubr.bf16.mxu0 0
      %2205 = vmatmul.mubr.bf16.gmra.mxu0 %v2161
      %v2206 = vpop.f32.mrf.mxu0
      %v2207 = vadd.f32 0.0, %v2206
      %v2208 = vpop.f32.mrf.mxu0
      %v2209 = vadd.f32 0.0, %v2208
      %v2210 = vpop.f32.mrf.mxu0
      %v2211 = vadd.f32 0.0, %v2210
      %v2212 = vpop.f32.mrf.mxu0
      %v2213 = vadd.f32 0.0, %v2212
      %2214 = vmatprep.mubr.bf16.mxu0 0
      %2215 = vmatmul.mubr.bf16.gmra.mxu0 %v2164
      %v2216 = vpop.f32.mrf.mxu0
      %v2217 = vadd.f32 0.0, %v2216
      %v2218 = vpop.f32.mrf.mxu0
      %v2219 = vadd.f32 0.0, %v2218
      %v2220 = vpop.f32.mrf.mxu0
      %v2221 = vadd.f32 0.0, %v2220
      %v2222 = vpop.f32.mrf.mxu0
      %v2223 = vadd.f32 0.0, %v2222
      %2224 = vmatprep.mubr.bf16.mxu0 0
      %2225 = vmatmul.mubr.bf16.gmra.mxu0 %v2167
      %v2226 = vpop.f32.mrf.mxu0
      %v2227 = vadd.f32 0.0, %v2226
      %v2228 = vpop.f32.mrf.mxu0
      %v2229 = vadd.f32 0.0, %v2228
      %v2230 = vpop.f32.mrf.mxu0
      %v2231 = vadd.f32 0.0, %v2230
      %v2232 = vpop.f32.mrf.mxu0
      %v2233 = vadd.f32 0.0, %v2232
      %2234 = vmatprep.mubr.bf16.mxu0 0
      %2235 = vmatmul.mubr.bf16.gmra.mxu0 %v2170
      %v2236 = vpop.f32.mrf.mxu0
      %v2237 = vadd.f32 0.0, %v2236
      %v2238 = vpop.f32.mrf.mxu0
      %v2239 = vadd.f32 0.0, %v2238
      %v2240 = vpop.f32.mrf.mxu0
      %v2241 = vadd.f32 0.0, %v2240
      %v2242 = vpop.f32.mrf.mxu0
      %v2243 = vadd.f32 0.0, %v2242
      %2244 = vdwg.mxu0
      %2245 = vmatprep.subr.bf16.mxu0 0
      %2246 = vmatpush1.bf16.msra.mxu0 0
      %2247 = vmatprep.subr.bf16.mxu0 0
      %2248 = vmatpush1.bf16.msra.mxu0 0
      %2249 = vmatprep.subr.bf16.mxu0 0
      %2250 = vmatpush1.bf16.msra.mxu0 0
      %2251 = vmatprep.subr.bf16.mxu0 0
      %2252 = vmatpush1.bf16.msra.mxu0 0
      %2253 = vmatprep.subr.bf16.mxu0 %v2143
      %2254 = vmatpush1.bf16.msra.mxu0 %v2142
      %2255 = vmatprep.subr.bf16.mxu0 %v2139
      %2256 = vmatpush1.bf16.msra.mxu0 %v2138
      %2257 = vmatprep.subr.bf16.mxu0 %v2135
      %2258 = vmatpush1.bf16.msra.mxu0 %v2134
      %2259 = vmatprep.subr.bf16.mxu0 %v2131
      %2260 = vmatpush1.bf16.msra.mxu0 %v2130
      %2261 = vmatprep.subr.bf16.mxu0 0
      %2262 = vmatpush2.bf16.msra.mxu0 0
      %2263 = vmatprep.subr.bf16.mxu0 0
      %2264 = vmatpush2.bf16.msra.mxu0 0
      %2265 = vmatprep.subr.bf16.mxu0 0
      %2266 = vmatpush2.bf16.msra.mxu0 0
      %2267 = vmatprep.subr.bf16.mxu0 0
      %2268 = vmatpush2.bf16.msra.mxu0 0
      %2269 = vmatprep.subr.bf16.mxu0 0
      %2270 = vmatpush2.bf16.msra.mxu0 0
      %2271 = vmatprep.subr.bf16.mxu0 0
      %2272 = vmatpush2.bf16.msra.mxu0 0
      %2273 = vmatprep.subr.bf16.mxu0 0
      %2274 = vmatpush2.bf16.msra.mxu0 0
      %2275 = vmatprep.subr.bf16.mxu0 0
      %2276 = vmatpush2.bf16.msra.mxu0 0
      %2277 = vmatprep.mubr.bf16.mxu0 0
      %2278 = vmatmul.mubr.bf16.gmra.mxu0 %v2161
      %v2279 = vpop.f32.mrf.mxu0
      %v2280 = vadd.f32 0.0, %v2279
      %v2281 = vpop.f32.mrf.mxu0
      %v2282 = vadd.f32 0.0, %v2281
      %v2283 = vpop.f32.mrf.mxu0
      %v2284 = vadd.f32 0.0, %v2283
      %v2285 = vpop.f32.mrf.mxu0
      %v2286 = vadd.f32 0.0, %v2285
      %2287 = vmatprep.mubr.bf16.mxu0 0
      %2288 = vmatmul.mubr.bf16.gmra.mxu0 %v2164
      %v2289 = vpop.f32.mrf.mxu0
      %v2290 = vadd.f32 0.0, %v2289
      %v2291 = vpop.f32.mrf.mxu0
      %v2292 = vadd.f32 0.0, %v2291
      %v2293 = vpop.f32.mrf.mxu0
      %v2294 = vadd.f32 0.0, %v2293
      %v2295 = vpop.f32.mrf.mxu0
      %v2296 = vadd.f32 0.0, %v2295
      %2297 = vmatprep.mubr.bf16.mxu0 0
      %2298 = vmatmul.mubr.bf16.gmra.mxu0 %v2167
      %v2299 = vpop.f32.mrf.mxu0
      %v2300 = vadd.f32 0.0, %v2299
      %v2301 = vpop.f32.mrf.mxu0
      %v2302 = vadd.f32 0.0, %v2301
      %v2303 = vpop.f32.mrf.mxu0
      %v2304 = vadd.f32 0.0, %v2303
      %v2305 = vpop.f32.mrf.mxu0
      %v2306 = vadd.f32 0.0, %v2305
      %2307 = vmatprep.mubr.bf16.mxu0 0
      %2308 = vmatmul.mubr.bf16.gmra.mxu0 %v2170
      %v2309 = vpop.f32.mrf.mxu0
      %v2310 = vadd.f32 0.0, %v2309
      %v2311 = vpop.f32.mrf.mxu0
      %v2312 = vadd.f32 0.0, %v2311
      %v2313 = vpop.f32.mrf.mxu0
      %v2314 = vadd.f32 0.0, %v2313
      %v2315 = vpop.f32.mrf.mxu0
      %v2316 = vadd.f32 0.0, %v2315
      %2317 = vdwg.mxu0
      %v2334 = vunpack.c.l.b16 %v2043
      %v2335 = vunpack.c.h.b16 %v2043
      %v2336 = vunpack.c.l.b16 %v2044
      %v2337 = vunpack.c.h.b16 %v2044
      %v2338 = vunpack.c.l.b16 %v2045
      %v2339 = vunpack.c.h.b16 %v2045
      %v2340 = vunpack.c.l.b16 %v2046
      %v2341 = vunpack.c.h.b16 %v2046
      %v2342 = vunpack.c.l.b16 %v2047
      %v2343 = vunpack.c.h.b16 %v2047
      %v2344 = vunpack.c.l.b16 %v2048
      %v2345 = vunpack.c.h.b16 %v2048
      %v2346 = vunpack.c.l.b16 %v2049
      %v2347 = vunpack.c.h.b16 %v2049
      %v2348 = vunpack.c.l.b16 %v2050
      %v2349 = vunpack.c.h.b16 %v2050
      %v2350 = vunpack.c.l.b16 %v2051
      %v2351 = vunpack.c.h.b16 %v2051
      %v2352 = vunpack.c.l.b16 %v2052
      %v2353 = vunpack.c.h.b16 %v2052
      %v2354 = vunpack.c.l.b16 %v2053
      %v2355 = vunpack.c.h.b16 %v2053
      %v2356 = vunpack.c.l.b16 %v2054
      %v2357 = vunpack.c.h.b16 %v2054
      %v2358 = vunpack.c.l.b16 %v2055
      %v2359 = vunpack.c.h.b16 %v2055
      %v2360 = vunpack.c.l.b16 %v2056
      %v2361 = vunpack.c.h.b16 %v2056
      %v2362 = vunpack.c.l.b16 %v2057
      %v2363 = vunpack.c.h.b16 %v2057
      %v2364 = vunpack.c.l.b16 %v2058
      %v2365 = vunpack.c.h.b16 %v2058
      %v2366 = vpack.c.b16 %v2338, %v2334
      %v2367 = vpack.c.b16 %v2339, %v2335
      %v2368 = vpack.c.b16 %v2340, %v2336
      %v2369 = vpack.c.b16 %v2341, %v2337
      %v2370 = vpack.c.b16 %v2346, %v2342
      %v2371 = vpack.c.b16 %v2347, %v2343
      %v2372 = vpack.c.b16 %v2348, %v2344
      %v2373 = vpack.c.b16 %v2349, %v2345
      %v2374 = vpack.c.b16 %v2354, %v2350
      %v2375 = vpack.c.b16 %v2355, %v2351
      %v2376 = vpack.c.b16 %v2356, %v2352
      %v2377 = vpack.c.b16 %v2357, %v2353
      %v2378 = vpack.c.b16 %v2362, %v2358
      %v2379 = vpack.c.b16 %v2363, %v2359
      %v2380 = vpack.c.b16 %v2364, %v2360
      %v2381 = vpack.c.b16 %v2365, %v2361
      %v2399 = vsel %vm765, %v1260, 0
      %v2402 = vsel %vm765, %v1261, 0
      %v2405 = vsel %vm765, %v1262, 0
      %v2408 = vsel %vm765, %v1263, 0
      %2410 = vmatprep.subr.bf16.mxu0 0
      %2411 = vmatpush1.bf16.msra.mxu0 0
      %2412 = vmatprep.subr.bf16.mxu0 0
      %2413 = vmatpush1.bf16.msra.mxu0 0
      %2414 = vmatprep.subr.bf16.mxu0 0
      %2415 = vmatpush1.bf16.msra.mxu0 0
      %2416 = vmatprep.subr.bf16.mxu0 0
      %2417 = vmatpush1.bf16.msra.mxu0 0
      %2418 = vmatprep.subr.bf16.mxu0 %v2379
      %2419 = vmatpush1.bf16.msra.mxu0 %v2378
      %2420 = vmatprep.subr.bf16.mxu0 %v2375
      %2421 = vmatpush1.bf16.msra.mxu0 %v2374
      %2422 = vmatprep.subr.bf16.mxu0 %v2371
      %2423 = vmatpush1.bf16.msra.mxu0 %v2370
      %2424 = vmatprep.subr.bf16.mxu0 %v2367
      %2425 = vmatpush1.bf16.msra.mxu0 %v2366
      %2426 = vmatprep.subr.bf16.mxu0 0
      %2427 = vmatpush2.bf16.msra.mxu0 0
      %2428 = vmatprep.subr.bf16.mxu0 0
      %2429 = vmatpush2.bf16.msra.mxu0 0
      %2430 = vmatprep.subr.bf16.mxu0 0
      %2431 = vmatpush2.bf16.msra.mxu0 0
      %2432 = vmatprep.subr.bf16.mxu0 0
      %2433 = vmatpush2.bf16.msra.mxu0 0
      %2434 = vmatprep.subr.bf16.mxu0 0
      %2435 = vmatpush2.bf16.msra.mxu0 0
      %2436 = vmatprep.subr.bf16.mxu0 0
      %2437 = vmatpush2.bf16.msra.mxu0 0
      %2438 = vmatprep.subr.bf16.mxu0 0
      %2439 = vmatpush2.bf16.msra.mxu0 0
      %2440 = vmatprep.subr.bf16.mxu0 0
      %2441 = vmatpush2.bf16.msra.mxu0 0
      %2442 = vmatprep.mubr.bf16.mxu0 0
      %2443 = vmatmul.mubr.bf16.gmra.mxu0 %v2399
      %v2444 = vpop.f32.mrf.mxu0
      %v2445 = vadd.f32 %v2207, %v2444
      %v2446 = vpop.f32.mrf.mxu0
      %v2447 = vadd.f32 %v2209, %v2446
      %v2448 = vpop.f32.mrf.mxu0
      %v2449 = vadd.f32 %v2211, %v2448
      %v2450 = vpop.f32.mrf.mxu0
      %v2451 = vadd.f32 %v2213, %v2450
      %2452 = vmatprep.mubr.bf16.mxu0 0
      %2453 = vmatmul.mubr.bf16.gmra.mxu0 %v2402
      %v2454 = vpop.f32.mrf.mxu0
      %v2455 = vadd.f32 %v2217, %v2454
      %v2456 = vpop.f32.mrf.mxu0
      %v2457 = vadd.f32 %v2219, %v2456
      %v2458 = vpop.f32.mrf.mxu0
      %v2459 = vadd.f32 %v2221, %v2458
      %v2460 = vpop.f32.mrf.mxu0
      %v2461 = vadd.f32 %v2223, %v2460
      %2462 = vmatprep.mubr.bf16.mxu0 0
      %2463 = vmatmul.mubr.bf16.gmra.mxu0 %v2405
      %v2464 = vpop.f32.mrf.mxu0
      %v2465 = vadd.f32 %v2227, %v2464
      %v2466 = vpop.f32.mrf.mxu0
      %v2467 = vadd.f32 %v2229, %v2466
      %v2468 = vpop.f32.mrf.mxu0
      %v2469 = vadd.f32 %v2231, %v2468
      %v2470 = vpop.f32.mrf.mxu0
      %v2471 = vadd.f32 %v2233, %v2470
      %2472 = vmatprep.mubr.bf16.mxu0 0
      %2473 = vmatmul.mubr.bf16.gmra.mxu0 %v2408
      %v2474 = vpop.f32.mrf.mxu0
      %v2475 = vadd.f32 %v2237, %v2474
      %v2476 = vpop.f32.mrf.mxu0
      %v2477 = vadd.f32 %v2239, %v2476
      %v2478 = vpop.f32.mrf.mxu0
      %v2479 = vadd.f32 %v2241, %v2478
      %v2480 = vpop.f32.mrf.mxu0
      %v2481 = vadd.f32 %v2243, %v2480
      %2482 = vdwg.mxu0
      %2483 = vmatprep.subr.bf16.mxu0 0
      %2484 = vmatpush1.bf16.msra.mxu0 0
      %2485 = vmatprep.subr.bf16.mxu0 0
      %2486 = vmatpush1.bf16.msra.mxu0 0
      %2487 = vmatprep.subr.bf16.mxu0 0
      %2488 = vmatpush1.bf16.msra.mxu0 0
      %2489 = vmatprep.subr.bf16.mxu0 0
      %2490 = vmatpush1.bf16.msra.mxu0 0
      %2491 = vmatprep.subr.bf16.mxu0 %v2381
      %2492 = vmatpush1.bf16.msra.mxu0 %v2380
      %2493 = vmatprep.subr.bf16.mxu0 %v2377
      %2494 = vmatpush1.bf16.msra.mxu0 %v2376
      %2495 = vmatprep.subr.bf16.mxu0 %v2373
      %2496 = vmatpush1.bf16.msra.mxu0 %v2372
      %2497 = vmatprep.subr.bf16.mxu0 %v2369
      %2498 = vmatpush1.bf16.msra.mxu0 %v2368
      %2499 = vmatprep.subr.bf16.mxu0 0
      %2500 = vmatpush2.bf16.msra.mxu0 0
      %2501 = vmatprep.subr.bf16.mxu0 0
      %2502 = vmatpush2.bf16.msra.mxu0 0
      %2503 = vmatprep.subr.bf16.mxu0 0
      %2504 = vmatpush2.bf16.msra.mxu0 0
      %2505 = vmatprep.subr.bf16.mxu0 0
      %2506 = vmatpush2.bf16.msra.mxu0 0
      %2507 = vmatprep.subr.bf16.mxu0 0
      %2508 = vmatpush2.bf16.msra.mxu0 0
      %2509 = vmatprep.subr.bf16.mxu0 0
      %2510 = vmatpush2.bf16.msra.mxu0 0
      %2511 = vmatprep.subr.bf16.mxu0 0
      %2512 = vmatpush2.bf16.msra.mxu0 0
      %2513 = vmatprep.subr.bf16.mxu0 0
      %2514 = vmatpush2.bf16.msra.mxu0 0
      %2515 = vmatprep.mubr.bf16.mxu0 0
      %2516 = vmatmul.mubr.bf16.gmra.mxu0 %v2399
      %v2517 = vpop.f32.mrf.mxu0
      %v2518 = vadd.f32 %v2280, %v2517
      %v2519 = vpop.f32.mrf.mxu0
      %v2520 = vadd.f32 %v2282, %v2519
      %v2521 = vpop.f32.mrf.mxu0
      %v2522 = vadd.f32 %v2284, %v2521
      %v2523 = vpop.f32.mrf.mxu0
      %v2524 = vadd.f32 %v2286, %v2523
      %2525 = vmatprep.mubr.bf16.mxu0 0
      %2526 = vmatmul.mubr.bf16.gmra.mxu0 %v2402
      %v2527 = vpop.f32.mrf.mxu0
      %v2528 = vadd.f32 %v2290, %v2527
      %v2529 = vpop.f32.mrf.mxu0
      %v2530 = vadd.f32 %v2292, %v2529
      %v2531 = vpop.f32.mrf.mxu0
      %v2532 = vadd.f32 %v2294, %v2531
      %v2533 = vpop.f32.mrf.mxu0
      %v2534 = vadd.f32 %v2296, %v2533
      %2535 = vmatprep.mubr.bf16.mxu0 0
      %2536 = vmatmul.mubr.bf16.gmra.mxu0 %v2405
      %v2537 = vpop.f32.mrf.mxu0
      %v2538 = vadd.f32 %v2300, %v2537
      %v2539 = vpop.f32.mrf.mxu0
      %v2540 = vadd.f32 %v2302, %v2539
      %v2541 = vpop.f32.mrf.mxu0
      %v2542 = vadd.f32 %v2304, %v2541
      %v2543 = vpop.f32.mrf.mxu0
      %v2544 = vadd.f32 %v2306, %v2543
      %2545 = vmatprep.mubr.bf16.mxu0 0
      %2546 = vmatmul.mubr.bf16.gmra.mxu0 %v2408
      %v2547 = vpop.f32.mrf.mxu0
      %v2548 = vadd.f32 %v2310, %v2547
      %v2549 = vpop.f32.mrf.mxu0
      %v2550 = vadd.f32 %v2312, %v2549
      %v2551 = vpop.f32.mrf.mxu0
      %v2552 = vadd.f32 %v2314, %v2551
      %v2553 = vpop.f32.mrf.mxu0
      %v2554 = vadd.f32 %v2316, %v2553
      %2555 = vdwg.mxu0
      %v2556 = vld [vmem:[%s8] sm:$0xf]
      %v2558 = vlaneseq
      %v2559 = vshrl.u32 %v2558, 7
      %v2560 = vsub.s32 0, %v2559
      %v2561 = vrot.slane %v2556, %v2560
      %v2562 = vlaneseq
      %v2563 = vshrl.u32 %v2562, 7
      %v2564 = vsub.s32 1, %v2563
      %v2565 = vrot.slane %v2556, %v2564
      %v2566 = vlaneseq
      %v2567 = vshrl.u32 %v2566, 7
      %v2568 = vsub.s32 2, %v2567
      %v2569 = vrot.slane %v2556, %v2568
      %v2570 = vlaneseq
      %v2571 = vshrl.u32 %v2570, 7
      %v2572 = vsub.s32 3, %v2571
      %v2573 = vrot.slane %v2556, %v2572
      %v2578 = vadd.f32 %v2445, %v2561
      %v2579 = vadd.f32 %v2447, %v2565
      %v2580 = vadd.f32 %v2518, %v2569
      %v2581 = vadd.f32 %v2520, %v2573
      %v2582 = vadd.f32 %v2449, %v2561
      %v2583 = vadd.f32 %v2451, %v2565
      %v2584 = vadd.f32 %v2522, %v2569
      %v2585 = vadd.f32 %v2524, %v2573
      %v2586 = vadd.f32 %v2455, %v2561
      %v2587 = vadd.f32 %v2457, %v2565
      %v2588 = vadd.f32 %v2528, %v2569
      %v2589 = vadd.f32 %v2530, %v2573
      %v2590 = vadd.f32 %v2459, %v2561
      %v2591 = vadd.f32 %v2461, %v2565
      %v2592 = vadd.f32 %v2532, %v2569
      %v2593 = vadd.f32 %v2534, %v2573
      %v2594 = vadd.f32 %v2465, %v2561
      %v2595 = vadd.f32 %v2467, %v2565
      %v2596 = vadd.f32 %v2538, %v2569
      %v2597 = vadd.f32 %v2540, %v2573
      %v2598 = vadd.f32 %v2469, %v2561
      %v2599 = vadd.f32 %v2471, %v2565
      %v2600 = vadd.f32 %v2542, %v2569
      %v2601 = vadd.f32 %v2544, %v2573
      %v2602 = vadd.f32 %v2475, %v2561
      %v2603 = vadd.f32 %v2477, %v2565
      %v2604 = vadd.f32 %v2548, %v2569
      %v2605 = vadd.f32 %v2550, %v2573
      %v2606 = vadd.f32 %v2479, %v2561
      %v2607 = vadd.f32 %v2481, %v2565
      %v2608 = vadd.f32 %v2552, %v2569
      %v2609 = vadd.f32 %v2554, %v2573
      %2610 = vxpose.xlu0.b32.start [1/16] %v2578, 128
      %2611 = vxpose.xlu0.b32.cont [2/16] %v2582, 128
      %2612 = vxpose.xlu0.b32.cont [3/16] %v2586, 128
      %2613 = vxpose.xlu0.b32.cont [4/16] %v2590, 128
      %2614 = vxpose.xlu0.b32.cont [5/16] %v2594, 128
      %2615 = vxpose.xlu0.b32.cont [6/16] %v2598, 128
      %2616 = vxpose.xlu0.b32.cont [7/16] %v2602, 128
      %2617 = vxpose.xlu0.b32.cont [8/16] %v2606, 128
      %2618 = vxpose.xlu0.b32.cont [9/16] 0.0, 128
      %2619 = vxpose.xlu0.b32.cont [10/16] 0.0, 128
      %2620 = vxpose.xlu0.b32.cont [11/16] 0.0, 128
      %2621 = vxpose.xlu0.b32.cont [12/16] 0.0, 128
      %2622 = vxpose.xlu0.b32.cont [13/16] 0.0, 128
      %2623 = vxpose.xlu0.b32.cont [14/16] 0.0, 128
      %2624 = vxpose.xlu0.b32.cont [15/16] 0.0, 128
      %2625 = vxpose.xlu0.b32.end [16/16] 0.0, 128
      %v2626 = vpop.trf.xlu0
      %v2627 = vpop.trf.xlu0
      %v2628 = vpop.trf.xlu0
      %v2629 = vpop.trf.xlu0
      %v2630 = vpop.trf.xlu0
      %v2631 = vpop.trf.xlu0
      %v2632 = vpop.trf.xlu0
      %v2633 = vpop.trf.xlu0
      %v2634 = vpop.trf.xlu0
      %v2635 = vpop.trf.xlu0
      %v2636 = vpop.trf.xlu0
      %v2637 = vpop.trf.xlu0
      %v2638 = vpop.trf.xlu0
      %v2639 = vpop.trf.xlu0
      %v2640 = vpop.trf.xlu0
      %v2641 = vpop.trf.xlu0
      %2642 = vxpose.xlu0.b32.start [1/16] %v2579, 128
      %2643 = vxpose.xlu0.b32.cont [2/16] %v2583, 128
      %2644 = vxpose.xlu0.b32.cont [3/16] %v2587, 128
      %2645 = vxpose.xlu0.b32.cont [4/16] %v2591, 128
      %2646 = vxpose.xlu0.b32.cont [5/16] %v2595, 128
      %2647 = vxpose.xlu0.b32.cont [6/16] %v2599, 128
      %2648 = vxpose.xlu0.b32.cont [7/16] %v2603, 128
      %2649 = vxpose.xlu0.b32.cont [8/16] %v2607, 128
      %2650 = vxpose.xlu0.b32.cont [9/16] 0.0, 128
      %2651 = vxpose.xlu0.b32.cont [10/16] 0.0, 128
      %2652 = vxpose.xlu0.b32.cont [11/16] 0.0, 128
      %2653 = vxpose.xlu0.b32.cont [12/16] 0.0, 128
      %2654 = vxpose.xlu0.b32.cont [13/16] 0.0, 128
      %2655 = vxpose.xlu0.b32.cont [14/16] 0.0, 128
      %2656 = vxpose.xlu0.b32.cont [15/16] 0.0, 128
      %2657 = vxpose.xlu0.b32.end [16/16] 0.0, 128
      %v2658 = vpop.trf.xlu0
      %v2659 = vpop.trf.xlu0
      %v2660 = vpop.trf.xlu0
      %v2661 = vpop.trf.xlu0
      %v2662 = vpop.trf.xlu0
      %v2663 = vpop.trf.xlu0
      %v2664 = vpop.trf.xlu0
      %v2665 = vpop.trf.xlu0
      %v2666 = vpop.trf.xlu0
      %v2667 = vpop.trf.xlu0
      %v2668 = vpop.trf.xlu0
      %v2669 = vpop.trf.xlu0
      %v2670 = vpop.trf.xlu0
      %v2671 = vpop.trf.xlu0
      %v2672 = vpop.trf.xlu0
      %v2673 = vpop.trf.xlu0
      %2674 = vxpose.xlu0.b32.start [1/16] %v2580, 128
      %2675 = vxpose.xlu0.b32.cont [2/16] %v2584, 128
      %2676 = vxpose.xlu0.b32.cont [3/16] %v2588, 128
      %2677 = vxpose.xlu0.b32.cont [4/16] %v2592, 128
      %2678 = vxpose.xlu0.b32.cont [5/16] %v2596, 128
      %2679 = vxpose.xlu0.b32.cont [6/16] %v2600, 128
      %2680 = vxpose.xlu0.b32.cont [7/16] %v2604, 128
      %2681 = vxpose.xlu0.b32.cont [8/16] %v2608, 128
      %2682 = vxpose.xlu0.b32.cont [9/16] 0.0, 128
      %2683 = vxpose.xlu0.b32.cont [10/16] 0.0, 128
      %2684 = vxpose.xlu0.b32.cont [11/16] 0.0, 128
      %2685 = vxpose.xlu0.b32.cont [12/16] 0.0, 128
      %2686 = vxpose.xlu0.b32.cont [13/16] 0.0, 128
      %2687 = vxpose.xlu0.b32.cont [14/16] 0.0, 128
      %2688 = vxpose.xlu0.b32.cont [15/16] 0.0, 128
      %2689 = vxpose.xlu0.b32.end [16/16] 0.0, 128
      %v2690 = vpop.trf.xlu0
      %v2691 = vpop.trf.xlu0
      %v2692 = vpop.trf.xlu0
      %v2693 = vpop.trf.xlu0
      %v2694 = vpop.trf.xlu0
      %v2695 = vpop.trf.xlu0
      %v2696 = vpop.trf.xlu0
      %v2697 = vpop.trf.xlu0
      %v2698 = vpop.trf.xlu0
      %v2699 = vpop.trf.xlu0
      %v2700 = vpop.trf.xlu0
      %v2701 = vpop.trf.xlu0
      %v2702 = vpop.trf.xlu0
      %v2703 = vpop.trf.xlu0
      %v2704 = vpop.trf.xlu0
      %v2705 = vpop.trf.xlu0
      %2706 = vxpose.xlu0.b32.start [1/16] %v2581, 128
      %2707 = vxpose.xlu0.b32.cont [2/16] %v2585, 128
      %2708 = vxpose.xlu0.b32.cont [3/16] %v2589, 128
      %2709 = vxpose.xlu0.b32.cont [4/16] %v2593, 128
      %2710 = vxpose.xlu0.b32.cont [5/16] %v2597, 128
      %2711 = vxpose.xlu0.b32.cont [6/16] %v2601, 128
      %2712 = vxpose.xlu0.b32.cont [7/16] %v2605, 128
      %2713 = vxpose.xlu0.b32.cont [8/16] %v2609, 128
      %2714 = vxpose.xlu0.b32.cont [9/16] 0.0, 128
      %2715 = vxpose.xlu0.b32.cont [10/16] 0.0, 128
      %2716 = vxpose.xlu0.b32.cont [11/16] 0.0, 128
      %2717 = vxpose.xlu0.b32.cont [12/16] 0.0, 128
      %2718 = vxpose.xlu0.b32.cont [13/16] 0.0, 128
      %2719 = vxpose.xlu0.b32.cont [14/16] 0.0, 128
      %2720 = vxpose.xlu0.b32.cont [15/16] 0.0, 128
      %2721 = vxpose.xlu0.b32.end [16/16] 0.0, 128
      %v2722 = vpop.trf.xlu0
      %v2723 = vpop.trf.xlu0
      %v2724 = vpop.trf.xlu0
      %v2725 = vpop.trf.xlu0
      %v2726 = vpop.trf.xlu0
      %v2727 = vpop.trf.xlu0
      %v2728 = vpop.trf.xlu0
      %v2729 = vpop.trf.xlu0
      %v2730 = vpop.trf.xlu0
      %v2731 = vpop.trf.xlu0
      %v2732 = vpop.trf.xlu0
      %v2733 = vpop.trf.xlu0
      %v2734 = vpop.trf.xlu0
      %v2735 = vpop.trf.xlu0
      %v2736 = vpop.trf.xlu0
      %v2737 = vpop.trf.xlu0
      %v2738 = vadd.f32 %v334, %v2626
      %v2739 = vadd.f32 %v335, %v2627
      %v2740 = vadd.f32 %v336, %v2628
      %v2741 = vadd.f32 %v337, %v2629
      %v2742 = vadd.f32 %v338, %v2630
      %v2743 = vadd.f32 %v339, %v2631
      %v2744 = vadd.f32 %v340, %v2632
      %v2745 = vadd.f32 %v341, %v2633
      %v2746 = vadd.f32 %v342, %v2634
      %v2747 = vadd.f32 %v343, %v2635
      %v2748 = vadd.f32 %v344, %v2636
      %v2749 = vadd.f32 %v345, %v2637
      %v2750 = vadd.f32 %v346, %v2638
      %v2751 = vadd.f32 %v347, %v2639
      %v2752 = vadd.f32 %v348, %v2640
      %v2753 = vadd.f32 %v349, %v2641
      %v2754 = vadd.f32 %v350, %v2658
      %v2755 = vadd.f32 %v351, %v2659
      %v2756 = vadd.f32 %v352, %v2660
      %v2757 = vadd.f32 %v353, %v2661
      %v2758 = vadd.f32 %v354, %v2662
      %v2759 = vadd.f32 %v355, %v2663
      %v2760 = vadd.f32 %v356, %v2664
      %v2761 = vadd.f32 %v357, %v2665
      %v2762 = vadd.f32 %v358, %v2666
      %v2763 = vadd.f32 %v359, %v2667
      %v2764 = vadd.f32 %v360, %v2668
      %v2765 = vadd.f32 %v361, %v2669
      %v2766 = vadd.f32 %v362, %v2670
      %v2767 = vadd.f32 %v363, %v2671
      %v2768 = vadd.f32 %v364, %v2672
      %v2769 = vadd.f32 %v365, %v2673
      %v2770 = vadd.f32 %v366, %v2690
      %v2771 = vadd.f32 %v367, %v2691
      %v2772 = vadd.f32 %v368, %v2692
      %v2773 = vadd.f32 %v369, %v2693
      %v2774 = vadd.f32 %v370, %v2694
      %v2775 = vadd.f32 %v371, %v2695
      %v2776 = vadd.f32 %v372, %v2696
      %v2777 = vadd.f32 %v373, %v2697
      %v2778 = vadd.f32 %v374, %v2698
      %v2779 = vadd.f32 %v375, %v2699
      %v2780 = vadd.f32 %v376, %v2700
      %v2781 = vadd.f32 %v377, %v2701
      %v2782 = vadd.f32 %v378, %v2702
      %v2783 = vadd.f32 %v379, %v2703
      %v2784 = vadd.f32 %v380, %v2704
      %v2785 = vadd.f32 %v381, %v2705
      %v2786 = vadd.f32 %v382, %v2722
      %v2787 = vadd.f32 %v383, %v2723
      %v2788 = vadd.f32 %v384, %v2724
      %v2789 = vadd.f32 %v385, %v2725
      %v2790 = vadd.f32 %v386, %v2726
      %v2791 = vadd.f32 %v387, %v2727
      %v2792 = vadd.f32 %v388, %v2728
      %v2793 = vadd.f32 %v389, %v2729
      %v2794 = vmax.f32 %v2738, 0.0
      %v2795 = vmax.f32 %v2739, 0.0
      %v2796 = vmax.f32 %v2740, 0.0
      %v2797 = vmax.f32 %v2741, 0.0
      %v2798 = vmax.f32 %v2742, 0.0
      %v2799 = vmax.f32 %v2743, 0.0
      %v2800 = vmax.f32 %v2744, 0.0
      %v2801 = vmax.f32 %v2745, 0.0
      %v2802 = vmax.f32 %v2746, 0.0
      %v2803 = vmax.f32 %v2747, 0.0
      %v2804 = vmax.f32 %v2748, 0.0
      %v2805 = vmax.f32 %v2749, 0.0
      %v2806 = vmax.f32 %v2750, 0.0
      %v2807 = vmax.f32 %v2751, 0.0
      %v2808 = vmax.f32 %v2752, 0.0
      %v2809 = vmax.f32 %v2753, 0.0
      %v2810 = vmax.f32 %v2754, 0.0
      %v2811 = vmax.f32 %v2755, 0.0
      %v2812 = vmax.f32 %v2756, 0.0
      %v2813 = vmax.f32 %v2757, 0.0
      %v2814 = vmax.f32 %v2758, 0.0
      %v2815 = vmax.f32 %v2759, 0.0
      %v2816 = vmax.f32 %v2760, 0.0
      %v2817 = vmax.f32 %v2761, 0.0
      %v2818 = vmax.f32 %v2762, 0.0
      %v2819 = vmax.f32 %v2763, 0.0
      %v2820 = vmax.f32 %v2764, 0.0
      %v2821 = vmax.f32 %v2765, 0.0
      %v2822 = vmax.f32 %v2766, 0.0
      %v2823 = vmax.f32 %v2767, 0.0
      %v2824 = vmax.f32 %v2768, 0.0
      %v2825 = vmax.f32 %v2769, 0.0
      %v2826 = vmax.f32 %v2770, 0.0
      %v2827 = vmax.f32 %v2771, 0.0
      %v2828 = vmax.f32 %v2772, 0.0
      %v2829 = vmax.f32 %v2773, 0.0
      %v2830 = vmax.f32 %v2774, 0.0
      %v2831 = vmax.f32 %v2775, 0.0
      %v2832 = vmax.f32 %v2776, 0.0
      %v2833 = vmax.f32 %v2777, 0.0
      %v2834 = vmax.f32 %v2778, 0.0
      %v2835 = vmax.f32 %v2779, 0.0
      %v2836 = vmax.f32 %v2780, 0.0
      %v2837 = vmax.f32 %v2781, 0.0
      %v2838 = vmax.f32 %v2782, 0.0
      %v2839 = vmax.f32 %v2783, 0.0
      %v2840 = vmax.f32 %v2784, 0.0
      %v2841 = vmax.f32 %v2785, 0.0
      %v2842 = vmax.f32 %v2786, 0.0
      %v2843 = vmax.f32 %v2787, 0.0
      %v2844 = vmax.f32 %v2788, 0.0
      %v2845 = vmax.f32 %v2789, 0.0
      %v2846 = vmax.f32 %v2790, 0.0
      %v2847 = vmax.f32 %v2791, 0.0
      %v2848 = vmax.f32 %v2792, 0.0
      %v2849 = vmax.f32 %v2793, 0.0
      %2850 = vst.msk [vmem:[%s332] sm:$0xff] %vm765, %v2794
      %2851 = vst.msk [vmem:[%s332 + $0x8] sm:$0xff] %vm765, %v2795
      %2852 = vst.msk [vmem:[%s332 + $0x10] sm:$0xff] %vm765, %v2796
      %2853 = vst.msk [vmem:[%s332 + $0x18] sm:$0xff] %vm765, %v2797
      %2854 = vst.msk [vmem:[%s332 + $0x20] sm:$0xff] %vm765, %v2798
      %2855 = vst.msk [vmem:[%s332 + $0x28] sm:$0xff] %vm765, %v2799
      %2856 = vst.msk [vmem:[%s332 + $0x30] sm:$0xff] %vm765, %v2800
      %2857 = vst.msk [vmem:[%s332 + $0x38] sm:$0xff] %vm765, %v2801
      %2858 = vst.msk [vmem:[%s332 + $0x40] sm:$0xff] %vm765, %v2802
      %2859 = vst.msk [vmem:[%s332 + $0x48] sm:$0xff] %vm765, %v2803
      %2860 = vst.msk [vmem:[%s332 + $0x50] sm:$0xff] %vm765, %v2804
      %2861 = vst.msk [vmem:[%s332 + $0x58] sm:$0xff] %vm765, %v2805
      %2862 = vst.msk [vmem:[%s332 + $0x60] sm:$0xff] %vm765, %v2806
      %2863 = vst.msk [vmem:[%s332 + $0x68] sm:$0xff] %vm765, %v2807
      %2864 = vst.msk [vmem:[%s332 + $0x70] sm:$0xff] %vm765, %v2808
      %2865 = vst.msk [vmem:[%s332 + $0x78] sm:$0xff] %vm765, %v2809
      %2866 = vst.msk [vmem:[%s332 + $0x80] sm:$0xff] %vm765, %v2810
      %2867 = vst.msk [vmem:[%s332 + $0x88] sm:$0xff] %vm765, %v2811
      %2868 = vst.msk [vmem:[%s332 + $0x90] sm:$0xff] %vm765, %v2812
      %2869 = vst.msk [vmem:[%s332 + $0x98] sm:$0xff] %vm765, %v2813
      %2870 = vst.msk [vmem:[%s332 + $0xa0] sm:$0xff] %vm765, %v2814
      %2871 = vst.msk [vmem:[%s332 + $0xa8] sm:$0xff] %vm765, %v2815
      %2872 = vst.msk [vmem:[%s332 + $0xb0] sm:$0xff] %vm765, %v2816
      %2873 = vst.msk [vmem:[%s332 + $0xb8] sm:$0xff] %vm765, %v2817
      %2874 = vst.msk [vmem:[%s332 + $0xc0] sm:$0xff] %vm765, %v2818
      %2875 = vst.msk [vmem:[%s332 + $0xc8] sm:$0xff] %vm765, %v2819
      %2876 = vst.msk [vmem:[%s332 + $0xd0] sm:$0xff] %vm765, %v2820
      %2877 = vst.msk [vmem:[%s332 + $0xd8] sm:$0xff] %vm765, %v2821
      %2878 = vst.msk [vmem:[%s332 + $0xe0] sm:$0xff] %vm765, %v2822
      %2879 = vst.msk [vmem:[%s332 + $0xe8] sm:$0xff] %vm765, %v2823
      %2880 = vst.msk [vmem:[%s332 + $0xf0] sm:$0xff] %vm765, %v2824
      %2881 = vst.msk [vmem:[%s332 + $0xf8] sm:$0xff] %vm765, %v2825
      %2882 = vst.msk [vmem:[%s332 + $0x100] sm:$0xff] %vm765, %v2826
      %2883 = vst.msk [vmem:[%s332 + $0x108] sm:$0xff] %vm765, %v2827
      %2884 = vst.msk [vmem:[%s332 + $0x110] sm:$0xff] %vm765, %v2828
      %2885 = vst.msk [vmem:[%s332 + $0x118] sm:$0xff] %vm765, %v2829
      %2886 = vst.msk [vmem:[%s332 + $0x120] sm:$0xff] %vm765, %v2830
      %2887 = vst.msk [vmem:[%s332 + $0x128] sm:$0xff] %vm765, %v2831
      %2888 = vst.msk [vmem:[%s332 + $0x130] sm:$0xff] %vm765, %v2832
      %2889 = vst.msk [vmem:[%s332 + $0x138] sm:$0xff] %vm765, %v2833
      %2890 = vst.msk [vmem:[%s332 + $0x140] sm:$0xff] %vm765, %v2834
      %2891 = vst.msk [vmem:[%s332 + $0x148] sm:$0xff] %vm765, %v2835
      %2892 = vst.msk [vmem:[%s332 + $0x150] sm:$0xff] %vm765, %v2836
      %2893 = vst.msk [vmem:[%s332 + $0x158] sm:$0xff] %vm765, %v2837
      %2894 = vst.msk [vmem:[%s332 + $0x160] sm:$0xff] %vm765, %v2838
      %2895 = vst.msk [vmem:[%s332 + $0x168] sm:$0xff] %vm765, %v2839
      %2896 = vst.msk [vmem:[%s332 + $0x170] sm:$0xff] %vm765, %v2840
      %2897 = vst.msk [vmem:[%s332 + $0x178] sm:$0xff] %vm765, %v2841
      %2898 = vst.msk [vmem:[%s332 + $0x180] sm:$0xff] %vm765, %v2842
      %2899 = vst.msk [vmem:[%s332 + $0x188] sm:$0xff] %vm765, %v2843
      %2900 = vst.msk [vmem:[%s332 + $0x190] sm:$0xff] %vm765, %v2844
      %2901 = vst.msk [vmem:[%s332 + $0x198] sm:$0xff] %vm765, %v2845
      %2902 = vst.msk [vmem:[%s332 + $0x1a0] sm:$0xff] %vm765, %v2846
      %2903 = vst.msk [vmem:[%s332 + $0x1a8] sm:$0xff] %vm765, %v2847
      %2904 = vst.msk [vmem:[%s332 + $0x1b0] sm:$0xff] %vm765, %v2848
      %2905 = vst.msk [vmem:[%s332 + $0x1b8] sm:$0xff] %vm765, %v2849
      %p2906 = scmp.lt.s32.totalorder %s20, 1
      %s2907 = scalar_select %p2906, %s20, 1
      %s2908 = smul.addr %s2907, 56
      %s2909 = smul.addr %s2908, 8
      %s2910 = scalar_lea.vmem %s9, %s2909
      // Predicated region
      $region57: #{tpu_custom_call.1} parent=55 // pred_check
        %p2911 = pneg %p232
      $region58: #{tpu_custom_call.1} parent=55 // pred_check_branch
        %2913 = sbr.rel (%p2911) target = $region60
      $region59: #{tpu_custom_call.1} parent=55 // pred_region
        _
      $region60: #{tpu_custom_call.1} parent=55 // pred_fallthru
        _
    $region56: #{tpu_custom_call.1} parent=5 // pred_fallthru
      _
    %p2914 = scmp.le.s32.totalorder 2, %s15
    // Predicated region
    $region61: #{tpu_custom_call.1} parent=5 // pred_check
      %p2915 = pneg %p2914
    $region62: #{tpu_custom_call.1} parent=5 // pred_check_branch
      %2917 = sbr.rel (%p2915) target = $region64
    $region63: #{tpu_custom_call.1} parent=5 // pred_region
      %s2918 = ssub.s32 %s15, 2
      // Predicated region
      $region65: #{tpu_custom_call.1} parent=63 // pred_check
        %p2919 = pneg %p238
      $region66: #{tpu_custom_call.1} parent=63 // pred_check_branch
        %2921 = sbr.rel (%p2919) target = $region68
      $region67: #{tpu_custom_call.1} parent=63 // pred_region
        %p2922 = scmp.lt.s32.totalorder %s21, 1
        %s2923 = scalar_select %p2922, %s21, 1
        %s2924 = smul.addr %s2923, 56
        %s2925 = smul.addr %s2924, 8
        %s2926 = scalar_lea.vmem %s9, %s2925
      $region68: #{tpu_custom_call.1} parent=63 // pred_fallthru
        _
    $region64: #{tpu_custom_call.1} parent=5 // pred_fallthru
      _
  $region6: #{tpu_custom_call.1} parent=0 // loop_footer
    %s19 = sadd.s32 1, %s15
  $region7: #{tpu_custom_call.1} parent=0 // loop_footer_branch
    %14 = sbr.rel target = $region3
  $region8: #{tpu_custom_call.1} parent=0 // loop_exit
    _

</llo_original>
